<compile_context>
chip_gen: v5e
topology: v5e:2x2
jax: 0.10.0
libtpu: 0.0.40
codegen_flags: <defaults>
</compile_context>

<pallas_src>
import functools

import jax
import jax.numpy as jnp
from jax import lax
from jax.experimental import pallas as pl
from jax.experimental.pallas import tpu as pltpu


_LN_EPS = 1e-5
_NEG_BIG = -1e30            # finite "mask" value (safe if intermediates go bf16)
_VMEM_LIMIT = 48 * 1024 * 1024


def _pick_row_tile(m, target=256):
    """Largest multiple-of-8 row tile <= target that divides m (or full m)."""
    if m <= target:
        return m
    t = (target // 8) * 8
    while t >= 8:
        if m % t == 0:
            return t
        t -= 8
    return m


def _pick_col_tile(n, target=512):
    """Largest multiple-of-128 lane tile <= target that divides n (or full n)."""
    if n <= target:
        return n
    t = (target // 128) * 128
    while t >= 128:
        if n % t == 0:
            return t
        t -= 128
    return n


# --------------------- fused attention sublayer kernel ----------------------
# out = x + Proj( concat_h softmax(mask(Q_h K_h^T / sqrt(hs))) V_h )
# gridded over batch only; LN1, fused QKV matmul, per-head attention and the
# output projection + residual all happen inside the kernel.

def _attn_block_kernel(x_ref, g_ref, b_ref, wqkv_ref, pw_ref, pb_ref, o_ref, *,
                       num_heads, head_size, embed_size):
    H, hs, D = num_heads, head_size, embed_size
    x = x_ref[0]                                              # (T, D) f32
    T = x.shape[0]

    # LayerNorm (f32 vector math).
    mean = jnp.mean(x, axis=-1, keepdims=True)
    var = jnp.mean((x - mean) ** 2, axis=-1, keepdims=True)
    xn = (x - mean) * lax.rsqrt(var + _LN_EPS)
    xn = xn * g_ref[...] + b_ref[...]

    # One wide, lane-dense MXU matmul for Q/K/V of all heads.
    qkv = jnp.dot(xn.astype(jnp.bfloat16), wqkv_ref[...],
                  preferred_element_type=jnp.float32)         # (T, H*(2hs+D))
    q_all = qkv[:, : H * hs]
    k_all = qkv[:, H * hs: 2 * H * hs]
    v_all = qkv[:, 2 * H * hs:]

    # Causal mask hoisted out of the per-head loop.
    row = lax.broadcasted_iota(jnp.int32, (T, T), 0)
    col = lax.broadcasted_iota(jnp.int32, (T, T), 1)
    causal = col <= row
    scale = 1.0 / (hs ** 0.5)

    pw = pw_ref[...]                                          # (H*D, D) bf16
    acc = jnp.zeros((T, D), jnp.float32)

    for h in range(H):                                        # static unroll
        q = q_all[:, h * hs:(h + 1) * hs].astype(jnp.bfloat16)
        k = k_all[:, h * hs:(h + 1) * hs].astype(jnp.bfloat16)
        v = v_all[:, h * D:(h + 1) * D].astype(jnp.bfloat16)

        # Q K^T via dot_general (contract last dims, no explicit transpose).
        s = lax.dot_general(q, k, (((1,), (1,)), ((), ())),
                            preferred_element_type=jnp.float32) * scale
        s = jnp.where(causal, s, _NEG_BIG)
        s = s - jnp.max(s, axis=-1, keepdims=True)
        p = jnp.exp(s)
        p = p * pl.reciprocal(jnp.sum(p, axis=-1, keepdims=True), approx=True)

        head_out = jnp.dot(p.astype(jnp.bfloat16), v,
                           preferred_element_type=jnp.float32)   # (T, D)

        # concat_h(head_out) @ Wp  ==  sum_h head_out_h @ Wp[h*D:(h+1)*D]
        acc = acc + jnp.dot(head_out.astype(jnp.bfloat16),
                            pw[h * D:(h + 1) * D, :],
                            preferred_element_type=jnp.float32)

    # Residual add fused into the output write.
    o_ref[0] = x + acc + pb_ref[...]


def attn_block(x, ln_g, ln_b, wqkv, proj_w, proj_b, *, num_heads, head_size):
    B, T, D = x.shape
    Wtot = wqkv.shape[1]
    return pl.pallas_call(
        functools.partial(_attn_block_kernel, num_heads=num_heads,
                          head_size=head_size, embed_size=D),
        out_shape=jax.ShapeDtypeStruct((B, T, D), jnp.float32),
        grid=(B,),
        in_specs=[
            pl.BlockSpec((1, T, D), lambda b: (b, 0, 0)),
            pl.BlockSpec((1, D), lambda b: (0, 0)),
            pl.BlockSpec((1, D), lambda b: (0, 0)),
            pl.BlockSpec((D, Wtot), lambda b: (0, 0)),
            pl.BlockSpec((num_heads * D, D), lambda b: (0, 0)),
            pl.BlockSpec((1, D), lambda b: (0, 0)),
        ],
        out_specs=pl.BlockSpec((1, T, D), lambda b: (b, 0, 0)),
        compiler_params=pltpu.CompilerParams(
            dimension_semantics=("parallel",),
            vmem_limit_bytes=_VMEM_LIMIT),
    )(x, ln_g.reshape(1, D), ln_b.reshape(1, D), wqkv, proj_w,
      proj_b.reshape(1, D))


# ------------------------ fused FFN sublayer kernel -------------------------
# out = x + lin2( relu( lin1( LN2(x) ) ) ),  tiled over rows.

def _ffn_block_kernel(x_ref, g_ref, b_ref, w1_ref, b1_ref, w2_ref, b2_ref,
                      o_ref):
    x = x_ref[...]                                            # (tm, D) f32
    mean = jnp.mean(x, axis=-1, keepdims=True)
    var = jnp.mean((x - mean) ** 2, axis=-1, keepdims=True)
    xn = (x - mean) * lax.rsqrt(var + _LN_EPS)
    xn = xn * g_ref[...] + b_ref[...]

    h = jnp.dot(xn.astype(jnp.bfloat16), w1_ref[...],
                preferred_element_type=jnp.float32) + b1_ref[...]
    h = jnp.maximum(h, 0.0)
    y = jnp.dot(h.astype(jnp.bfloat16), w2_ref[...],
                preferred_element_type=jnp.float32) + b2_ref[...]
    o_ref[...] = x + y


def ffn_block(x2d, ln_g, ln_b, w1, b1, w2, b2, *, row_tile=256):
    M, D = x2d.shape
    Dh = w1.shape[1]
    tm = _pick_row_tile(M, row_tile)
    return pl.pallas_call(
        _ffn_block_kernel,
        out_shape=jax.ShapeDtypeStruct((M, D), jnp.float32),
        grid=(M // tm,),
        in_specs=[
            pl.BlockSpec((tm, D), lambda i: (i, 0)),
            pl.BlockSpec((1, D), lambda i: (0, 0)),
            pl.BlockSpec((1, D), lambda i: (0, 0)),
            pl.BlockSpec((D, Dh), lambda i: (0, 0)),
            pl.BlockSpec((1, Dh), lambda i: (0, 0)),
            pl.BlockSpec((Dh, D), lambda i: (0, 0)),
            pl.BlockSpec((1, D), lambda i: (0, 0)),
        ],
        out_specs=pl.BlockSpec((tm, D), lambda i: (i, 0)),
        compiler_params=pltpu.CompilerParams(
            dimension_semantics=("parallel",),
            vmem_limit_bytes=_VMEM_LIMIT),
    )(x2d, ln_g.reshape(1, D), ln_b.reshape(1, D), w1, b1.reshape(1, Dh),
      w2, b2.reshape(1, D))


# -------------------- fused final-LN + lm_head kernel -----------------------
# logits = LN_f(x) @ W + b, tiled over (rows, vocab columns) so the (D, V)
# weight streams through VMEM instead of being pinned.

def _lm_head_kernel(x_ref, g_ref, b_ref, w_ref, bias_ref, o_ref):
    x = x_ref[...]                                            # (tm, D) f32
    mean = jnp.mean(x, axis=-1, keepdims=True)
    var = jnp.mean((x - mean) ** 2, axis=-1, keepdims=True)
    xn = (x - mean) * lax.rsqrt(var + _LN_EPS)
    xn = xn * g_ref[...] + b_ref[...]
    o_ref[...] = jnp.dot(xn.astype(jnp.bfloat16), w_ref[...],
                         preferred_element_type=jnp.float32) + bias_ref[...]


def lm_head(x2d, ln_g, ln_b, w, bias, *, row_tile=256, col_tile=512):
    M, D = x2d.shape
    V = w.shape[1]
    tm = _pick_row_tile(M, row_tile)
    tn = _pick_col_tile(V, col_tile)
    return pl.pallas_call(
        _lm_head_kernel,
        out_shape=jax.ShapeDtypeStruct((M, V), jnp.float32),
        grid=(M // tm, V // tn),
        in_specs=[
            pl.BlockSpec((tm, D), lambda i, j: (i, 0)),
            pl.BlockSpec((1, D), lambda i, j: (0, 0)),
            pl.BlockSpec((1, D), lambda i, j: (0, 0)),
            pl.BlockSpec((D, tn), lambda i, j: (0, j)),
            pl.BlockSpec((1, tn), lambda i, j: (0, j)),
        ],
        out_specs=pl.BlockSpec((tm, tn), lambda i, j: (i, j)),
        compiler_params=pltpu.CompilerParams(
            dimension_semantics=("parallel", "parallel"),
            vmem_limit_bytes=_VMEM_LIMIT),
    )(x2d, ln_g.reshape(1, D), ln_b.reshape(1, D), w, bias.reshape(1, V))


# -------------------------- parameter construction --------------------------

def init_params(key, vocab_size, context_window_size, embed_size, num_heads,
                n_layers):
    hs = embed_size // num_heads
    n_keys = 3 + n_layers * (3 * num_heads + 3)
    keys = iter(jax.random.split(key, n_keys))

    def normal(shape):
        return 0.02 * jax.random.normal(next(keys), shape, dtype=jnp.float32)

    params = {
        "token_emb": normal((vocab_size, embed_size)),
        "pos_emb": normal((context_window_size, embed_size)),
        "lnf_g": jnp.ones((embed_size,), jnp.float32),
        "lnf_b": jnp.zeros((embed_size,), jnp.float32),
        # torch lm_head weight (V, D) -> stored transposed (D, V), bf16 MXU operand
        "lm_w": normal((vocab_size, embed_size)).T.astype(jnp.bfloat16),
        "lm_b": jnp.zeros((vocab_size,), jnp.float32),
        "blocks": [],
    }

    for _ in range(n_layers):
        # Per-head weights (torch stores (out, in)); pre-transpose to (D, out)
        # and fuse all heads' Q, K, V into one wide weight (D, H*(2*hs + D)).
        wq = [normal((hs, embed_size)).T for _ in range(num_heads)]          # (D, hs)
        wk = [normal((hs, embed_size)).T for _ in range(num_heads)]          # (D, hs)
        wv = [normal((embed_size, embed_size)).T for _ in range(num_heads)]  # (D, D)
        wqkv = jnp.concatenate(wq + wk + wv, axis=1).astype(jnp.bfloat16)

        blk = {
            "ln1_g": jnp.ones((embed_size,), jnp.float32),
            "ln1_b": jnp.zeros((embed_size,), jnp.float32),
            "ln2_g": jnp.ones((embed_size,), jnp.float32),
            "ln2_b": jnp.zeros((embed_size,), jnp.float32),
            "wqkv": wqkv,
            # proj: Linear(H*D, D) -> stored (H*D, D)
            "proj_w": normal((embed_size, num_heads * embed_size)).T.astype(jnp.bfloat16),
            "proj_b": jnp.zeros((embed_size,), jnp.float32),
            # ffn
            "lin1_w": normal((4 * embed_size, embed_size)).T.astype(jnp.bfloat16),
            "lin1_b": jnp.zeros((4 * embed_size,), jnp.float32),
            "lin2_w": normal((embed_size, 4 * embed_size)).T.astype(jnp.bfloat16),
            "lin2_b": jnp.zeros((embed_size,), jnp.float32),
        }
        params["blocks"].append(blk)
    return params


# --------------------------------- forward ----------------------------------

def transformer_lm_forward(params, token_ids, num_heads, head_size):
    # NOTE: no corda_adapter parameters exist in this module instance, so
    # apply_corda_adapter_if_any reduces to the plain nn.Linear path.
    B, T = token_ids.shape
    ctx = params["pos_emb"].shape[0]
    if T > ctx:
        token_ids = token_ids[:, -ctx:]
        T = ctx

    D = params["token_emb"].shape[1]
    tok = params["token_emb"][token_ids]         # embedding gather (XLA glue)
    pos = params["pos_emb"][:T]
    x = tok + pos[None, :, :]                    # (B, T, D) f32

    for blk in params["blocks"]:
        # attention sublayer: x = x + Proj(MHA(LN1(x)))   (single fused kernel)
        x = attn_block(x, blk["ln1_g"], blk["ln1_b"], blk["wqkv"],
                       blk["proj_w"], blk["proj_b"],
                       num_heads=num_heads, head_size=head_size)
        # ffn sublayer: x = x + lin2(relu(lin1(LN2(x))))  (single fused kernel)
        x2d = x.reshape(B * T, D)
        x = ffn_block(x2d, blk["ln2_g"], blk["ln2_b"],
                      blk["lin1_w"], blk["lin1_b"],
                      blk["lin2_w"], blk["lin2_b"]).reshape(B, T, D)

    logits = lm_head(x.reshape(B * T, D), params["lnf_g"], params["lnf_b"],
                     params["lm_w"], params["lm_b"])
    V = params["lm_w"].shape[1]
    # TODO(synk): targets/cross-entropy loss path not implemented (forward-only).
    return logits.reshape(B, T, V)


# ----------------------------------- main ------------------------------------

if __name__ == "__main__":
    vocab_size = 64
    context_window_size = 16
    embed_size = 32
    num_heads = 4
    n_layers = 2
    head_size = embed_size // num_heads

    B, T = 2, 8

    key = jax.random.PRNGKey(0)
    pkey, dkey = jax.random.split(key)
    params = init_params(pkey, vocab_size, context_window_size, embed_size,
                         num_heads, n_layers)
    token_ids = jax.random.randint(dkey, (B, T), 0, vocab_size, dtype=jnp.int32)

    fwd = jax.jit(functools.partial(transformer_lm_forward,
                                    num_heads=num_heads, head_size=head_size))
    logits = jax.block_until_ready(fwd(params, token_ids))

    assert logits.shape == (B, T, vocab_size)
    assert logits.dtype == jnp.float32
    assert bool(jnp.all(jnp.isfinite(logits)))
    print("KERNEL_OK")
</pallas_src>

<mosaic_0001>
module attributes {stable_mosaic.version = 11 : i64} {
  func.func @_lm_head_kernel(%arg0: i32, %arg1: i32, %arg2: memref<16x32xf32, #tpu.memory_space<vmem>>, %arg3: memref<1x32xf32, #tpu.memory_space<vmem>>, %arg4: memref<1x32xf32, #tpu.memory_space<vmem>>, %arg5: memref<32x64xbf16, #tpu.memory_space<vmem>>, %arg6: memref<1x64xf32, #tpu.memory_space<vmem>>, %arg7: memref<16x64xf32, #tpu.memory_space<vmem>>) attributes {dimension_semantics = [#tpu.dimension_semantics<parallel>, #tpu.dimension_semantics<parallel>], iteration_bounds = array<i64: 1, 1>, scalar_prefetch = 0 : i64, scratch_operands = 0 : i64, tpu.core_type = #tpu.core_type<tc>, window_params = [{transform_indices = @transform_0, window_bounds = array<i64: 16, 32>}, {pipeline_mode = #tpu.pipeline_mode<synchronous>, transform_indices = @transform_1, window_bounds = array<i64: 1, 32>}, {pipeline_mode = #tpu.pipeline_mode<synchronous>, transform_indices = @transform_2, window_bounds = array<i64: 1, 32>}, {transform_indices = @transform_3, window_bounds = array<i64: 32, 64>}, {transform_indices = @transform_4, window_bounds = array<i64: 1, 64>}, {transform_indices = @transform_5, window_bounds = array<i64: 16, 64>}]} {
    %c0 = arith.constant 0 : index
    %c0_0 = arith.constant 0 : index
    %0 = vector.load %arg2[%c0, %c0_0] : memref<16x32xf32, #tpu.memory_space<vmem>>, vector<16x32xf32>
    %cst = arith.constant dense<0.000000e+00> : vector<16xf32>
    %1 = vector.multi_reduction <add>, %0, %cst [1] : vector<16x32xf32> to vector<16xf32>
    %2 = vector.shape_cast %1 : vector<16xf32> to vector<16x1xf32>
    %cst_1 = arith.constant 3.200000e+01 : f32
    %3 = vector.broadcast %cst_1 : f32 to vector<16x1xf32>
    %4 = arith.divf %2, %3 : vector<16x1xf32>
    %5 = vector.broadcast %4 : vector<16x1xf32> to vector<16x32xf32>
    %6 = arith.subf %0, %5 : vector<16x32xf32>
    %7 = arith.mulf %6, %6 : vector<16x32xf32>
    %cst_2 = arith.constant dense<0.000000e+00> : vector<16xf32>
    %8 = vector.multi_reduction <add>, %7, %cst_2 [1] : vector<16x32xf32> to vector<16xf32>
    %9 = vector.shape_cast %8 : vector<16xf32> to vector<16x1xf32>
    %cst_3 = arith.constant 3.200000e+01 : f32
    %10 = vector.broadcast %cst_3 : f32 to vector<16x1xf32>
    %11 = arith.divf %9, %10 : vector<16x1xf32>
    %12 = vector.broadcast %4 : vector<16x1xf32> to vector<16x32xf32>
    %13 = arith.subf %0, %12 : vector<16x32xf32>
    %cst_4 = arith.constant 9.99999974E-6 : f32
    %14 = vector.broadcast %cst_4 : f32 to vector<16x1xf32>
    %15 = arith.addf %11, %14 : vector<16x1xf32>
    %16 = math.rsqrt %15 : vector<16x1xf32>
    %17 = vector.broadcast %16 : vector<16x1xf32> to vector<16x32xf32>
    %18 = arith.mulf %13, %17 : vector<16x32xf32>
    %c0_5 = arith.constant 0 : index
    %c0_6 = arith.constant 0 : index
    %19 = vector.load %arg3[%c0_5, %c0_6] : memref<1x32xf32, #tpu.memory_space<vmem>>, vector<1x32xf32>
    %20 = vector.broadcast %19 : vector<1x32xf32> to vector<16x32xf32>
    %21 = arith.mulf %18, %20 : vector<16x32xf32>
    %c0_7 = arith.constant 0 : index
    %c0_8 = arith.constant 0 : index
    %22 = vector.load %arg4[%c0_7, %c0_8] : memref<1x32xf32, #tpu.memory_space<vmem>>, vector<1x32xf32>
    %23 = vector.broadcast %22 : vector<1x32xf32> to vector<16x32xf32>
    %24 = arith.addf %21, %23 : vector<16x32xf32>
    %25 = arith.truncf %24 : vector<16x32xf32> to vector<16x32xbf16>
    %c0_9 = arith.constant 0 : index
    %c0_10 = arith.constant 0 : index
    %26 = vector.load %arg5[%c0_9, %c0_10] : memref<32x64xbf16, #tpu.memory_space<vmem>>, vector<32x64xbf16>
    %cst_11 = arith.constant dense<0.000000e+00> : vector<16x64xf32>
    %27 = tpu.matmul %25, %26, %cst_11 {dimension_numbers = #tpu.dot_dimension_numbers<[1], [0], [0], [1], [0, 0, 1, 1], [], []>} : vector<16x32xbf16>, vector<32x64xbf16>, vector<16x64xf32> -> vector<16x64xf32>
    %c0_12 = arith.constant 0 : index
    %c0_13 = arith.constant 0 : index
    %28 = vector.load %arg6[%c0_12, %c0_13] : memref<1x64xf32, #tpu.memory_space<vmem>>, vector<1x64xf32>
    %29 = vector.broadcast %28 : vector<1x64xf32> to vector<16x64xf32>
    %30 = arith.addf %27, %29 : vector<16x64xf32>
    %c0_14 = arith.constant 0 : index
    %c0_15 = arith.constant 0 : index
    %31 = vector.load %arg7[%c0_14, %c0_15] : memref<16x64xf32, #tpu.memory_space<vmem>>, vector<16x64xf32>
    tpu.vector_store %arg7[%c0_14, %c0_15], %30 {strides = array<i32>} : memref<16x64xf32, #tpu.memory_space<vmem>>, vector<16x64xf32>,
    return
  }
  func.func @transform_0(%arg0: i32, %arg1: i32) -> (i32, i32) {
    %c0_i32 = arith.constant 0 : i32
    %c0_i32_0 = arith.constant 0 : i32
    return %arg0, %c0_i32 : i32, i32
  }
  func.func @transform_1(%arg0: i32, %arg1: i32) -> (i32, i32) {
    %c0_i32 = arith.constant 0 : i32
    %c0_i32_0 = arith.constant 0 : i32
    %c0_i32_1 = arith.constant 0 : i32
    return %c0_i32, %c0_i32_0 : i32, i32
  }
  func.func @transform_2(%arg0: i32, %arg1: i32) -> (i32, i32) {
    %c0_i32 = arith.constant 0 : i32
    %c0_i32_0 = arith.constant 0 : i32
    %c0_i32_1 = arith.constant 0 : i32
    return %c0_i32, %c0_i32_0 : i32, i32
  }
  func.func @transform_3(%arg0: i32, %arg1: i32) -> (i32, i32) {
    %c0_i32 = arith.constant 0 : i32
    %c0_i32_0 = arith.constant 0 : i32
    return %c0_i32, %arg1 : i32, i32
  }
  func.func @transform_4(%arg0: i32, %arg1: i32) -> (i32, i32) {
    %c0_i32 = arith.constant 0 : i32
    %c0_i32_0 = arith.constant 0 : i32
    return %c0_i32, %arg1 : i32, i32
  }
  func.func @transform_5(%arg0: i32, %arg1: i32) -> (i32, i32) {
    %c0_i32 = arith.constant 0 : i32
    return %arg0, %arg1 : i32, i32
  }
}

module attributes {stable_mosaic.version = 11 : i64} {
  func.func @_attn_block_kernel(%arg0: i32, %arg1: memref<1x8x32xf32, #tpu.memory_space<vmem>>, %arg2: memref<1x32xf32, #tpu.memory_space<vmem>>, %arg3: memref<1x32xf32, #tpu.memory_space<vmem>>, %arg4: memref<32x192xbf16, #tpu.memory_space<vmem>>, %arg5: memref<128x32xbf16, #tpu.memory_space<vmem>>, %arg6: memref<1x32xf32, #tpu.memory_space<vmem>>, %arg7: memref<1x8x32xf32, #tpu.memory_space<vmem>>) attributes {dimension_semantics = [#tpu.dimension_semantics<parallel>], iteration_bounds = array<i64: 2>, scalar_prefetch = 0 : i64, scratch_operands = 0 : i64, tpu.core_type = #tpu.core_type<tc>, window_params = [{transform_indices = @transform_0, window_bounds = array<i64: 1, 8, 32>}, {pipeline_mode = #tpu.pipeline_mode<synchronous>, transform_indices = @transform_1, window_bounds = array<i64: 1, 32>}, {pipeline_mode = #tpu.pipeline_mode<synchronous>, transform_indices = @transform_2, window_bounds = array<i64: 1, 32>}, {pipeline_mode = #tpu.pipeline_mode<synchronous>, transform_indices = @transform_3, window_bounds = array<i64: 32, 192>}, {pipeline_mode = #tpu.pipeline_mode<synchronous>, transform_indices = @transform_4, window_bounds = array<i64: 128, 32>}, {pipeline_mode = #tpu.pipeline_mode<synchronous>, transform_indices = @transform_5, window_bounds = array<i64: 1, 32>}, {transform_indices = @transform_6, window_bounds = array<i64: 1, 8, 32>}]} {
    %c0 = arith.constant 0 : index
    %c0_0 = arith.constant 0 : index
    %c0_1 = arith.constant 0 : index
    %0 = vector.load %arg1[%c0, %c0_0, %c0_1] : memref<1x8x32xf32, #tpu.memory_space<vmem>>, vector<1x8x32xf32>
    %1 = vector.shape_cast %0 : vector<1x8x32xf32> to vector<8x32xf32>
    %cst = arith.constant dense<0.000000e+00> : vector<8xf32>
    %2 = vector.multi_reduction <add>, %1, %cst [1] : vector<8x32xf32> to vector<8xf32>
    %3 = vector.shape_cast %2 : vector<8xf32> to vector<8x1xf32>
    %cst_2 = arith.constant 3.200000e+01 : f32
    %4 = vector.broadcast %cst_2 : f32 to vector<8x1xf32>
    %5 = arith.divf %3, %4 : vector<8x1xf32>
    %6 = vector.broadcast %5 : vector<8x1xf32> to vector<8x32xf32>
    %7 = arith.subf %1, %6 : vector<8x32xf32>
    %8 = arith.mulf %7, %7 : vector<8x32xf32>
    %cst_3 = arith.constant dense<0.000000e+00> : vector<8xf32>
    %9 = vector.multi_reduction <add>, %8, %cst_3 [1] : vector<8x32xf32> to vector<8xf32>
    %10 = vector.shape_cast %9 : vector<8xf32> to vector<8x1xf32>
    %cst_4 = arith.constant 3.200000e+01 : f32
    %11 = vector.broadcast %cst_4 : f32 to vector<8x1xf32>
    %12 = arith.divf %10, %11 : vector<8x1xf32>
    %13 = vector.broadcast %5 : vector<8x1xf32> to vector<8x32xf32>
    %14 = arith.subf %1, %13 : vector<8x32xf32>
    %cst_5 = arith.constant 9.99999974E-6 : f32
    %15 = vector.broadcast %cst_5 : f32 to vector<8x1xf32>
    %16 = arith.addf %12, %15 : vector<8x1xf32>
    %17 = math.rsqrt %16 : vector<8x1xf32>
    %18 = vector.broadcast %17 : vector<8x1xf32> to vector<8x32xf32>
    %19 = arith.mulf %14, %18 : vector<8x32xf32>
    %c0_6 = arith.constant 0 : index
    %c0_7 = arith.constant 0 : index
    %20 = vector.load %arg2[%c0_6, %c0_7] : memref<1x32xf32, #tpu.memory_space<vmem>>, vector<1x32xf32>
    %21 = vector.broadcast %20 : vector<1x32xf32> to vector<8x32xf32>
    %22 = arith.mulf %19, %21 : vector<8x32xf32>
    %c0_8 = arith.constant 0 : index
    %c0_9 = arith.constant 0 : index
    %23 = vector.load %arg3[%c0_8, %c0_9] : memref<1x32xf32, #tpu.memory_space<vmem>>, vector<1x32xf32>
    %24 = vector.broadcast %23 : vector<1x32xf32> to vector<8x32xf32>
    %25 = arith.addf %22, %24 : vector<8x32xf32>
    %26 = arith.truncf %25 : vector<8x32xf32> to vector<8x32xbf16>
    %c0_10 = arith.constant 0 : index
    %c0_11 = arith.constant 0 : index
    %27 = vector.load %arg4[%c0_10, %c0_11] : memref<32x192xbf16, #tpu.memory_space<vmem>>, vector<32x192xbf16>
    %cst_12 = arith.constant dense<0.000000e+00> : vector<8x192xf32>
    %28 = tpu.matmul %26, %27, %cst_12 {dimension_numbers = #tpu.dot_dimension_numbers<[1], [0], [0], [1], [0, 0, 1, 1], [], []>} : vector<8x32xbf16>, vector<32x192xbf16>, vector<8x192xf32> -> vector<8x192xf32>
    %29 = vector.extract_strided_slice %28 {offsets = [0, 0], sizes = [8, 32], strides = [1, 1]} : vector<8x192xf32> to vector<8x32xf32>
    %30 = vector.extract_strided_slice %28 {offsets = [0, 32], sizes = [8, 32], strides = [1, 1]} : vector<8x192xf32> to vector<8x32xf32>
    %31 = vector.extract_strided_slice %28 {offsets = [0, 64], sizes = [8, 128], strides = [1, 1]} : vector<8x192xf32> to vector<8x128xf32>
    %32 = tpu.iota {dimensions = array<i32: 0>} : vector<8x8xi32>
    %33 = tpu.iota {dimensions = array<i32: 1>} : vector<8x8xi32>
    %34 = arith.cmpi sle, %33, %32 : vector<8x8xi32>
    %c0_13 = arith.constant 0 : index
    %c0_14 = arith.constant 0 : index
    %35 = vector.load %arg5[%c0_13, %c0_14] : memref<128x32xbf16, #tpu.memory_space<vmem>>, vector<128x32xbf16>
    %cst_15 = arith.constant 0.000000e+00 : f32
    %36 = vector.broadcast %cst_15 : f32 to vector<8x32xf32>
    %37 = vector.extract_strided_slice %29 {offsets = [0, 0], sizes = [8, 8], strides = [1, 1]} : vector<8x32xf32> to vector<8x8xf32>
    %38 = arith.truncf %37 : vector<8x8xf32> to vector<8x8xbf16>
    %39 = vector.extract_strided_slice %30 {offsets = [0, 0], sizes = [8, 8], strides = [1, 1]} : vector<8x32xf32> to vector<8x8xf32>
    %40 = arith.truncf %39 : vector<8x8xf32> to vector<8x8xbf16>
    %41 = vector.extract_strided_slice %31 {offsets = [0, 0], sizes = [8, 32], strides = [1, 1]} : vector<8x128xf32> to vector<8x32xf32>
    %42 = arith.truncf %41 : vector<8x32xf32> to vector<8x32xbf16>
    %cst_16 = arith.constant dense<0.000000e+00> : vector<8x8xf32>
    %43 = tpu.matmul %38, %40, %cst_16 {dimension_numbers = #tpu.dot_dimension_numbers<[1], [1], [0], [0], [0, 0, 1, 0], [], []>} : vector<8x8xbf16>, vector<8x8xbf16>, vector<8x8xf32> -> vector<8x8xf32>
    %cst_17 = arith.constant 0.353553385 : f32
    %44 = vector.broadcast %cst_17 : f32 to vector<8x8xf32>
    %45 = arith.mulf %43, %44 : vector<8x8xf32>
    %cst_18 = arith.constant -1.000000e+30 : f32
    %46 = vector.broadcast %cst_18 : f32 to vector<8x8xf32>
    %47 = arith.select %34, %45, %46 : vector<8x8xi1>, vector<8x8xf32>
    %cst_19 = arith.constant dense<0xFF800000> : vector<8xf32>
    %48 = vector.multi_reduction <maximumf>, %47, %cst_19 [1] : vector<8x8xf32> to vector<8xf32>
    %49 = vector.shape_cast %48 : vector<8xf32> to vector<8x1xf32>
    %50 = vector.broadcast %49 : vector<8x1xf32> to vector<8x8xf32>
    %51 = arith.subf %47, %50 : vector<8x8xf32>
    %52 = math.exp %51 : vector<8x8xf32>
    %cst_20 = arith.constant dense<0.000000e+00> : vector<8xf32>
    %53 = vector.multi_reduction <add>, %52, %cst_20 [1] : vector<8x8xf32> to vector<8xf32>
    %54 = vector.shape_cast %53 : vector<8xf32> to vector<8x1xf32>
    %55 = tpu.reciprocal %54 {approx = true} : vector<8x1xf32> -> vector<8x1xf32>
    %56 = vector.broadcast %55 : vector<8x1xf32> to vector<8x8xf32>
    %57 = arith.mulf %52, %56 : vector<8x8xf32>
    %58 = arith.truncf %57 : vector<8x8xf32> to vector<8x8xbf16>
    %cst_21 = arith.constant dense<0.000000e+00> : vector<8x32xf32>
    %59 = tpu.matmul %58, %42, %cst_21 {dimension_numbers = #tpu.dot_dimension_numbers<[1], [0], [0], [1], [0, 0, 1, 1], [], []>} : vector<8x8xbf16>, vector<8x32xbf16>, vector<8x32xf32> -> vector<8x32xf32>
    %60 = arith.truncf %59 : vector<8x32xf32> to vector<8x32xbf16>
    %61 = vector.extract_strided_slice %35 {offsets = [0, 0], sizes = [32, 32], strides = [1, 1]} : vector<128x32xbf16> to vector<32x32xbf16>
    %cst_22 = arith.constant dense<0.000000e+00> : vector<8x32xf32>
    %62 = tpu.matmul %60, %61, %cst_22 {dimension_numbers = #tpu.dot_dimension_numbers<[1], [0], [0], [1], [0, 0, 1, 1], [], []>} : vector<8x32xbf16>, vector<32x32xbf16>, vector<8x32xf32> -> vector<8x32xf32>
    %63 = arith.addf %36, %62 : vector<8x32xf32>
    %64 = vector.extract_strided_slice %29 {offsets = [0, 8], sizes = [8, 8], strides = [1, 1]} : vector<8x32xf32> to vector<8x8xf32>
    %65 = arith.truncf %64 : vector<8x8xf32> to vector<8x8xbf16>
    %66 = vector.extract_strided_slice %30 {offsets = [0, 8], sizes = [8, 8], strides = [1, 1]} : vector<8x32xf32> to vector<8x8xf32>
    %67 = arith.truncf %66 : vector<8x8xf32> to vector<8x8xbf16>
    %68 = vector.extract_strided_slice %31 {offsets = [0, 32], sizes = [8, 32], strides = [1, 1]} : vector<8x128xf32> to vector<8x32xf32>
    %69 = arith.truncf %68 : vector<8x32xf32> to vector<8x32xbf16>
    %cst_23 = arith.constant dense<0.000000e+00> : vector<8x8xf32>
    %70 = tpu.matmul %65, %67, %cst_23 {dimension_numbers = #tpu.dot_dimension_numbers<[1], [1], [0], [0], [0, 0, 1, 0], [], []>} : vector<8x8xbf16>, vector<8x8xbf16>, vector<8x8xf32> -> vector<8x8xf32>
    %cst_24 = arith.constant 0.353553385 : f32
    %71 = vector.broadcast %cst_24 : f32 to vector<8x8xf32>
    %72 = arith.mulf %70, %71 : vector<8x8xf32>
    %cst_25 = arith.constant -1.000000e+30 : f32
    %73 = vector.broadcast %cst_25 : f32 to vector<8x8xf32>
    %74 = arith.select %34, %72, %73 : vector<8x8xi1>, vector<8x8xf32>
    %cst_26 = arith.constant dense<0xFF800000> : vector<8xf32>
    %75 = vector.multi_reduction <maximumf>, %74, %cst_26 [1] : vector<8x8xf32> to vector<8xf32>
    %76 = vector.shape_cast %75 : vector<8xf32> to vector<8x1xf32>
    %77 = vector.broadcast %76 : vector<8x1xf32> to vector<8x8xf32>
    %78 = arith.subf %74, %77 : vector<8x8xf32>
    %79 = math.exp %78 : vector<8x8xf32>
    %cst_27 = arith.constant dense<0.000000e+00> : vector<8xf32>
    %80 = vector.multi_reduction <add>, %79, %cst_27 [1] : vector<8x8xf32> to vector<8xf32>
    %81 = vector.shape_cast %80 : vector<8xf32> to vector<8x1xf32>
    %82 = tpu.reciprocal %81 {approx = true} : vector<8x1xf32> -> vector<8x1xf32>
    %83 = vector.broadcast %82 : vector<8x1xf32> to vector<8x8xf32>
    %84 = arith.mulf %79, %83 : vector<8x8xf32>
    %85 = arith.truncf %84 : vector<8x8xf32> to vector<8x8xbf16>
    %cst_28 = arith.constant dense<0.000000e+00> : vector<8x32xf32>
    %86 = tpu.matmul %85, %69, %cst_28 {dimension_numbers = #tpu.dot_dimension_numbers<[1], [0], [0], [1], [0, 0, 1, 1], [], []>} : vector<8x8xbf16>, vector<8x32xbf16>, vector<8x32xf32> -> vector<8x32xf32>
    %87 = arith.truncf %86 : vector<8x32xf32> to vector<8x32xbf16>
    %88 = vector.extract_strided_slice %35 {offsets = [32, 0], sizes = [32, 32], strides = [1, 1]} : vector<128x32xbf16> to vector<32x32xbf16>
    %cst_29 = arith.constant dense<0.000000e+00> : vector<8x32xf32>
    %89 = tpu.matmul %87, %88, %cst_29 {dimension_numbers = #tpu.dot_dimension_numbers<[1], [0], [0], [1], [0, 0, 1, 1], [], []>} : vector<8x32xbf16>, vector<32x32xbf16>, vector<8x32xf32> -> vector<8x32xf32>
    %90 = arith.addf %63, %89 : vector<8x32xf32>
    %91 = vector.extract_strided_slice %29 {offsets = [0, 16], sizes = [8, 8], strides = [1, 1]} : vector<8x32xf32> to vector<8x8xf32>
    %92 = arith.truncf %91 : vector<8x8xf32> to vector<8x8xbf16>
    %93 = vector.extract_strided_slice %30 {offsets = [0, 16], sizes = [8, 8], strides = [1, 1]} : vector<8x32xf32> to vector<8x8xf32>
    %94 = arith.truncf %93 : vector<8x8xf32> to vector<8x8xbf16>
    %95 = vector.extract_strided_slice %31 {offsets = [0, 64], sizes = [8, 32], strides = [1, 1]} : vector<8x128xf32> to vector<8x32xf32>
    %96 = arith.truncf %95 : vector<8x32xf32> to vector<8x32xbf16>
    %cst_30 = arith.constant dense<0.000000e+00> : vector<8x8xf32>
    %97 = tpu.matmul %92, %94, %cst_30 {dimension_numbers = #tpu.dot_dimension_numbers<[1], [1], [0], [0], [0, 0, 1, 0], [], []>} : vector<8x8xbf16>, vector<8x8xbf16>, vector<8x8xf32> -> vector<8x8xf32>
    %cst_31 = arith.constant 0.353553385 : f32
    %98 = vector.broadcast %cst_31 : f32 to vector<8x8xf32>
    %99 = arith.mulf %97, %98 : vector<8x8xf32>
    %cst_32 = arith.constant -1.000000e+30 : f32
    %100 = vector.broadcast %cst_32 : f32 to vector<8x8xf32>
    %101 = arith.select %34, %99, %100 : vector<8x8xi1>, vector<8x8xf32>
    %cst_33 = arith.constant dense<0xFF800000> : vector<8xf32>
    %102 = vector.multi_reduction <maximumf>, %101, %cst_33 [1] : vector<8x8xf32> to vector<8xf32>
    %103 = vector.shape_cast %102 : vector<8xf32> to vector<8x1xf32>
    %104 = vector.broadcast %103 : vector<8x1xf32> to vector<8x8xf32>
    %105 = arith.subf %101, %104 : vector<8x8xf32>
    %106 = math.exp %105 : vector<8x8xf32>
    %cst_34 = arith.constant dense<0.000000e+00> : vector<8xf32>
    %107 = vector.multi_reduction <add>, %106, %cst_34 [1] : vector<8x8xf32> to vector<8xf32>
    %108 = vector.shape_cast %107 : vector<8xf32> to vector<8x1xf32>
    %109 = tpu.reciprocal %108 {approx = true} : vector<8x1xf32> -> vector<8x1xf32>
    %110 = vector.broadcast %109 : vector<8x1xf32> to vector<8x8xf32>
    %111 = arith.mulf %106, %110 : vector<8x8xf32>
    %112 = arith.truncf %111 : vector<8x8xf32> to vector<8x8xbf16>
    %cst_35 = arith.constant dense<0.000000e+00> : vector<8x32xf32>
    %113 = tpu.matmul %112, %96, %cst_35 {dimension_numbers = #tpu.dot_dimension_numbers<[1], [0], [0], [1], [0, 0, 1, 1], [], []>} : vector<8x8xbf16>, vector<8x32xbf16>, vector<8x32xf32> -> vector<8x32xf32>
    %114 = arith.truncf %113 : vector<8x32xf32> to vector<8x32xbf16>
    %115 = vector.extract_strided_slice %35 {offsets = [64, 0], sizes = [32, 32], strides = [1, 1]} : vector<128x32xbf16> to vector<32x32xbf16>
    %cst_36 = arith.constant dense<0.000000e+00> : vector<8x32xf32>
    %116 = tpu.matmul %114, %115, %cst_36 {dimension_numbers = #tpu.dot_dimension_numbers<[1], [0], [0], [1], [0, 0, 1, 1], [], []>} : vector<8x32xbf16>, vector<32x32xbf16>, vector<8x32xf32> -> vector<8x32xf32>
    %117 = arith.addf %90, %116 : vector<8x32xf32>
    %118 = vector.extract_strided_slice %29 {offsets = [0, 24], sizes = [8, 8], strides = [1, 1]} : vector<8x32xf32> to vector<8x8xf32>
    %119 = arith.truncf %118 : vector<8x8xf32> to vector<8x8xbf16>
    %120 = vector.extract_strided_slice %30 {offsets = [0, 24], sizes = [8, 8], strides = [1, 1]} : vector<8x32xf32> to vector<8x8xf32>
    %121 = arith.truncf %120 : vector<8x8xf32> to vector<8x8xbf16>
    %122 = vector.extract_strided_slice %31 {offsets = [0, 96], sizes = [8, 32], strides = [1, 1]} : vector<8x128xf32> to vector<8x32xf32>
    %123 = arith.truncf %122 : vector<8x32xf32> to vector<8x32xbf16>
    %cst_37 = arith.constant dense<0.000000e+00> : vector<8x8xf32>
    %124 = tpu.matmul %119, %121, %cst_37 {dimension_numbers = #tpu.dot_dimension_numbers<[1], [1], [0], [0], [0, 0, 1, 0], [], []>} : vector<8x8xbf16>, vector<8x8xbf16>, vector<8x8xf32> -> vector<8x8xf32>
    %cst_38 = arith.constant 0.353553385 : f32
    %125 = vector.broadcast %cst_38 : f32 to vector<8x8xf32>
    %126 = arith.mulf %124, %125 : vector<8x8xf32>
    %cst_39 = arith.constant -1.000000e+30 : f32
    %127 = vector.broadcast %cst_39 : f32 to vector<8x8xf32>
    %128 = arith.select %34, %126, %127 : vector<8x8xi1>, vector<8x8xf32>
    %cst_40 = arith.constant dense<0xFF800000> : vector<8xf32>
    %129 = vector.multi_reduction <maximumf>, %128, %cst_40 [1] : vector<8x8xf32> to vector<8xf32>
    %130 = vector.shape_cast %129 : vector<8xf32> to vector<8x1xf32>
    %131 = vector.broadcast %130 : vector<8x1xf32> to vector<8x8xf32>
    %132 = arith.subf %128, %131 : vector<8x8xf32>
    %133 = math.exp %132 : vector<8x8xf32>
    %cst_41 = arith.constant dense<0.000000e+00> : vector<8xf32>
    %134 = vector.multi_reduction <add>, %133, %cst_41 [1] : vector<8x8xf32> to vector<8xf32>
    %135 = vector.shape_cast %134 : vector<8xf32> to vector<8x1xf32>
    %136 = tpu.reciprocal %135 {approx = true} : vector<8x1xf32> -> vector<8x1xf32>
    %137 = vector.broadcast %136 : vector<8x1xf32> to vector<8x8xf32>
    %138 = arith.mulf %133, %137 : vector<8x8xf32>
    %139 = arith.truncf %138 : vector<8x8xf32> to vector<8x8xbf16>
    %cst_42 = arith.constant dense<0.000000e+00> : vector<8x32xf32>
    %140 = tpu.matmul %139, %123, %cst_42 {dimension_numbers = #tpu.dot_dimension_numbers<[1], [0], [0], [1], [0, 0, 1, 1], [], []>} : vector<8x8xbf16>, vector<8x32xbf16>, vector<8x32xf32> -> vector<8x32xf32>
    %141 = arith.truncf %140 : vector<8x32xf32> to vector<8x32xbf16>
    %142 = vector.extract_strided_slice %35 {offsets = [96, 0], sizes = [32, 32], strides = [1, 1]} : vector<128x32xbf16> to vector<32x32xbf16>
    %cst_43 = arith.constant dense<0.000000e+00> : vector<8x32xf32>
    %143 = tpu.matmul %141, %142, %cst_43 {dimension_numbers = #tpu.dot_dimension_numbers<[1], [0], [0], [1], [0, 0, 1, 1], [], []>} : vector<8x32xbf16>, vector<32x32xbf16>, vector<8x32xf32> -> vector<8x32xf32>
    %144 = arith.addf %117, %143 : vector<8x32xf32>
    %145 = arith.addf %1, %144 : vector<8x32xf32>
    %c0_44 = arith.constant 0 : index
    %c0_45 = arith.constant 0 : index
    %146 = vector.load %arg6[%c0_44, %c0_45] : memref<1x32xf32, #tpu.memory_space<vmem>>, vector<1x32xf32>
    %147 = vector.broadcast %146 : vector<1x32xf32> to vector<8x32xf32>
    %148 = arith.addf %145, %147 : vector<8x32xf32>
    %c0_46 = arith.constant 0 : index
    %c0_47 = arith.constant 0 : index
    %c0_48 = arith.constant 0 : index
    %149 = vector.load %arg7[%c0_46, %c0_47, %c0_48] : memref<1x8x32xf32, #tpu.memory_space<vmem>>, vector<1x8x32xf32>
    %150 = vector.shape_cast %149 : vector<1x8x32xf32> to vector<8x32xf32>
    %151 = vector.shape_cast %148 : vector<8x32xf32> to vector<1x8x32xf32>
    tpu.vector_store %arg7[%c0_46, %c0_47, %c0_48], %151 {strides = array<i32>} : memref<1x8x32xf32, #tpu.memory_space<vmem>>, vector<1x8x32xf32>,
    return
  }
  func.func @transform_0(%arg0: i32) -> (i32, i32, i32) {
    %c0_i32 = arith.constant 0 : i32
    %c0_i32_0 = arith.constant 0 : i32
    %c0_i32_1 = arith.constant 0 : i32
    return %arg0, %c0_i32, %c0_i32_0 : i32, i32, i32
  }
  func.func @transform_1(%arg0: i32) -> (i32, i32) {
    %c0_i32 = arith.constant 0 : i32
    %c0_i32_0 = arith.constant 0 : i32
    %c0_i32_1 = arith.constant 0 : i32
    return %c0_i32, %c0_i32_0 : i32, i32
  }
  func.func @transform_2(%arg0: i32) -> (i32, i32) {
    %c0_i32 = arith.constant 0 : i32
    %c0_i32_0 = arith.constant 0 : i32
    %c0_i32_1 = arith.constant 0 : i32
    return %c0_i32, %c0_i32_0 : i32, i32
  }
  func.func @transform_3(%arg0: i32) -> (i32, i32) {
    %c0_i32 = arith.constant 0 : i32
    %c0_i32_0 = arith.constant 0 : i32
    %c0_i32_1 = arith.constant 0 : i32
    return %c0_i32, %c0_i32_0 : i32, i32
  }
  func.func @transform_4(%arg0: i32) -> (i32, i32) {
    %c0_i32 = arith.constant 0 : i32
    %c0_i32_0 = arith.constant 0 : i32
    %c0_i32_1 = arith.constant 0 : i32
    return %c0_i32, %c0_i32_0 : i32, i32
  }
  func.func @transform_5(%arg0: i32) -> (i32, i32) {
    %c0_i32 = arith.constant 0 : i32
    %c0_i32_0 = arith.constant 0 : i32
    %c0_i32_1 = arith.constant 0 : i32
    return %c0_i32, %c0_i32_0 : i32, i32
  }
  func.func @transform_6(%arg0: i32) -> (i32, i32, i32) {
    %c0_i32 = arith.constant 0 : i32
    %c0_i32_0 = arith.constant 0 : i32
    %c0_i32_1 = arith.constant 0 : i32
    return %arg0, %c0_i32, %c0_i32_0 : i32, i32, i32
  }
}

module attributes {stable_mosaic.version = 11 : i64} {
  func.func @_ffn_block_kernel(%arg0: i32, %arg1: memref<16x32xf32, #tpu.memory_space<vmem>>, %arg2: memref<1x32xf32, #tpu.memory_space<vmem>>, %arg3: memref<1x32xf32, #tpu.memory_space<vmem>>, %arg4: memref<32x128xbf16, #tpu.memory_space<vmem>>, %arg5: memref<1x128xf32, #tpu.memory_space<vmem>>, %arg6: memref<128x32xbf16, #tpu.memory_space<vmem>>, %arg7: memref<1x32xf32, #tpu.memory_space<vmem>>, %arg8: memref<16x32xf32, #tpu.memory_space<vmem>>) attributes {dimension_semantics = [#tpu.dimension_semantics<parallel>], iteration_bounds = array<i64: 1>, scalar_prefetch = 0 : i64, scratch_operands = 0 : i64, tpu.core_type = #tpu.core_type<tc>, window_params = [{transform_indices = @transform_0, window_bounds = array<i64: 16, 32>}, {pipeline_mode = #tpu.pipeline_mode<synchronous>, transform_indices = @transform_1, window_bounds = array<i64: 1, 32>}, {pipeline_mode = #tpu.pipeline_mode<synchronous>, transform_indices = @transform_2, window_bounds = array<i64: 1, 32>}, {pipeline_mode = #tpu.pipeline_mode<synchronous>, transform_indices = @transform_3, window_bounds = array<i64: 32, 128>}, {pipeline_mode = #tpu.pipeline_mode<synchronous>, transform_indices = @transform_4, window_bounds = array<i64: 1, 128>}, {pipeline_mode = #tpu.pipeline_mode<synchronous>, transform_indices = @transform_5, window_bounds = array<i64: 128, 32>}, {pipeline_mode = #tpu.pipeline_mode<synchronous>, transform_indices = @transform_6, window_bounds = array<i64: 1, 32>}, {transform_indices = @transform_7, window_bounds = array<i64: 16, 32>}]} {
    %c0 = arith.constant 0 : index
    %c0_0 = arith.constant 0 : index
    %0 = vector.load %arg1[%c0, %c0_0] : memref<16x32xf32, #tpu.memory_space<vmem>>, vector<16x32xf32>
    %cst = arith.constant dense<0.000000e+00> : vector<16xf32>
    %1 = vector.multi_reduction <add>, %0, %cst [1] : vector<16x32xf32> to vector<16xf32>
    %2 = vector.shape_cast %1 : vector<16xf32> to vector<16x1xf32>
    %cst_1 = arith.constant 3.200000e+01 : f32
    %3 = vector.broadcast %cst_1 : f32 to vector<16x1xf32>
    %4 = arith.divf %2, %3 : vector<16x1xf32>
    %5 = vector.broadcast %4 : vector<16x1xf32> to vector<16x32xf32>
    %6 = arith.subf %0, %5 : vector<16x32xf32>
    %7 = arith.mulf %6, %6 : vector<16x32xf32>
    %cst_2 = arith.constant dense<0.000000e+00> : vector<16xf32>
    %8 = vector.multi_reduction <add>, %7, %cst_2 [1] : vector<16x32xf32> to vector<16xf32>
    %9 = vector.shape_cast %8 : vector<16xf32> to vector<16x1xf32>
    %cst_3 = arith.constant 3.200000e+01 : f32
    %10 = vector.broadcast %cst_3 : f32 to vector<16x1xf32>
    %11 = arith.divf %9, %10 : vector<16x1xf32>
    %12 = vector.broadcast %4 : vector<16x1xf32> to vector<16x32xf32>
    %13 = arith.subf %0, %12 : vector<16x32xf32>
    %cst_4 = arith.constant 9.99999974E-6 : f32
    %14 = vector.broadcast %cst_4 : f32 to vector<16x1xf32>
    %15 = arith.addf %11, %14 : vector<16x1xf32>
    %16 = math.rsqrt %15 : vector<16x1xf32>
    %17 = vector.broadcast %16 : vector<16x1xf32> to vector<16x32xf32>
    %18 = arith.mulf %13, %17 : vector<16x32xf32>
    %c0_5 = arith.constant 0 : index
    %c0_6 = arith.constant 0 : index
    %19 = vector.load %arg2[%c0_5, %c0_6] : memref<1x32xf32, #tpu.memory_space<vmem>>, vector<1x32xf32>
    %20 = vector.broadcast %19 : vector<1x32xf32> to vector<16x32xf32>
    %21 = arith.mulf %18, %20 : vector<16x32xf32>
    %c0_7 = arith.constant 0 : index
    %c0_8 = arith.constant 0 : index
    %22 = vector.load %arg3[%c0_7, %c0_8] : memref<1x32xf32, #tpu.memory_space<vmem>>, vector<1x32xf32>
    %23 = vector.broadcast %22 : vector<1x32xf32> to vector<16x32xf32>
    %24 = arith.addf %21, %23 : vector<16x32xf32>
    %25 = arith.truncf %24 : vector<16x32xf32> to vector<16x32xbf16>
    %c0_9 = arith.constant 0 : index
    %c0_10 = arith.constant 0 : index
    %26 = vector.load %arg4[%c0_9, %c0_10] : memref<32x128xbf16, #tpu.memory_space<vmem>>, vector<32x128xbf16>
    %cst_11 = arith.constant dense<0.000000e+00> : vector<16x128xf32>
    %27 = tpu.matmul %25, %26, %cst_11 {dimension_numbers = #tpu.dot_dimension_numbers<[1], [0], [0], [1], [0, 0, 1, 1], [], []>} : vector<16x32xbf16>, vector<32x128xbf16>, vector<16x128xf32> -> vector<16x128xf32>
    %c0_12 = arith.constant 0 : index
    %c0_13 = arith.constant 0 : index
    %28 = vector.load %arg5[%c0_12, %c0_13] : memref<1x128xf32, #tpu.memory_space<vmem>>, vector<1x128xf32>
    %29 = vector.broadcast %28 : vector<1x128xf32> to vector<16x128xf32>
    %30 = arith.addf %27, %29 : vector<16x128xf32>
    %cst_14 = arith.constant 0.000000e+00 : f32
    %31 = vector.broadcast %cst_14 : f32 to vector<16x128xf32>
    %32 = arith.maximumf %30, %31 : vector<16x128xf32>
    %33 = arith.truncf %32 : vector<16x128xf32> to vector<16x128xbf16>
    %c0_15 = arith.constant 0 : index
    %c0_16 = arith.constant 0 : index
    %34 = vector.load %arg6[%c0_15, %c0_16] : memref<128x32xbf16, #tpu.memory_space<vmem>>, vector<128x32xbf16>
    %cst_17 = arith.constant dense<0.000000e+00> : vector<16x32xf32>
    %35 = tpu.matmul %33, %34, %cst_17 {dimension_numbers = #tpu.dot_dimension_numbers<[1], [0], [0], [1], [0, 0, 1, 1], [], []>} : vector<16x128xbf16>, vector<128x32xbf16>, vector<16x32xf32> -> vector<16x32xf32>
    %c0_18 = arith.constant 0 : index
    %c0_19 = arith.constant 0 : index
    %36 = vector.load %arg7[%c0_18, %c0_19] : memref<1x32xf32, #tpu.memory_space<vmem>>, vector<1x32xf32>
    %37 = vector.broadcast %36 : vector<1x32xf32> to vector<16x32xf32>
    %38 = arith.addf %35, %37 : vector<16x32xf32>
    %39 = arith.addf %0, %38 : vector<16x32xf32>
    %c0_20 = arith.constant 0 : index
    %c0_21 = arith.constant 0 : index
    %40 = vector.load %arg8[%c0_20, %c0_21] : memref<16x32xf32, #tpu.memory_space<vmem>>, vector<16x32xf32>
    tpu.vector_store %arg8[%c0_20, %c0_21], %39 {strides = array<i32>} : memref<16x32xf32, #tpu.memory_space<vmem>>, vector<16x32xf32>,
    return
  }
  func.func @transform_0(%arg0: i32) -> (i32, i32) {
    %c0_i32 = arith.constant 0 : i32
    %c0_i32_0 = arith.constant 0 : i32
    return %arg0, %c0_i32 : i32, i32
  }
  func.func @transform_1(%arg0: i32) -> (i32, i32) {
    %c0_i32 = arith.constant 0 : i32
    %c0_i32_0 = arith.constant 0 : i32
    %c0_i32_1 = arith.constant 0 : i32
    return %c0_i32, %c0_i32_0 : i32, i32
  }
  func.func @transform_2(%arg0: i32) -> (i32, i32) {
    %c0_i32 = arith.constant 0 : i32
    %c0_i32_0 = arith.constant 0 : i32
    %c0_i32_1 = arith.constant 0 : i32
    return %c0_i32, %c0_i32_0 : i32, i32
  }
  func.func @transform_3(%arg0: i32) -> (i32, i32) {
    %c0_i32 = arith.constant 0 : i32
    %c0_i32_0 = arith.constant 0 : i32
    %c0_i32_1 = arith.constant 0 : i32
    return %c0_i32, %c0_i32_0 : i32, i32
  }
  func.func @transform_4(%arg0: i32) -> (i32, i32) {
    %c0_i32 = arith.constant 0 : i32
    %c0_i32_0 = arith.constant 0 : i32
    %c0_i32_1 = arith.constant 0 : i32
    return %c0_i32, %c0_i32_0 : i32, i32
  }
  func.func @transform_5(%arg0: i32) -> (i32, i32) {
    %c0_i32 = arith.constant 0 : i32
    %c0_i32_0 = arith.constant 0 : i32
    %c0_i32_1 = arith.constant 0 : i32
    return %c0_i32, %c0_i32_0 : i32, i32
  }
  func.func @transform_6(%arg0: i32) -> (i32, i32) {
    %c0_i32 = arith.constant 0 : i32
    %c0_i32_0 = arith.constant 0 : i32
    %c0_i32_1 = arith.constant 0 : i32
    return %c0_i32, %c0_i32_0 : i32, i32
  }
  func.func @transform_7(%arg0: i32) -> (i32, i32) {
    %c0_i32 = arith.constant 0 : i32
    %c0_i32_0 = arith.constant 0 : i32
    return %arg0, %c0_i32 : i32, i32
  }
}

</mosaic_0001>

<llo_original>
// kernel: transformer_lm_forward.9
$region0: #{transformer_lm_forward.9}
  #allocation0 [shape = 'u32[]', space=smem, size = 0x4, offset = 0x4, fixed_abs, tag = 'smem constant byte address 0x4 - core index']
  #allocation1 [shape = 'u32[72,128]{1,0:T(1,128)}', space=vmem, size = 0x9000, scoped, tag = 'internal scratch']
  %s0 = inlined_call_operand.vmem [shape: f32[16,32], index: 0, kind: input, shape index: {}]
  %s1 = inlined_call_operand.vmem [shape: f32[1,32], index: 1, kind: input, shape index: {}]
  %s2 = inlined_call_operand.vmem [shape: f32[1,32], index: 2, kind: input, shape index: {}]
  %s3 = inlined_call_operand.vmem [shape: bf16[32,64], index: 3, kind: input, shape index: {}]
  %s4 = inlined_call_operand.vmem [shape: f32[1,64], index: 4, kind: input, shape index: {}]
  %s5 = inlined_call_operand.hbm [shape: f32[16,64], index: 5, kind: output, shape index: {}]
  %s6 = sld [smem:[#allocation0]]
  $region30: #{transformer_lm_forward.9} parent=0
    _
  %s8 = ssub.s32 1, %s6
  %s9 = scalar_select 0, %s8, %s6
  $region1: #{transformer_lm_forward.9} parent=0
    #allocation2 [shape = 'u8[8192]{0}', space=vmem, size = 0x2000, scoped, tag = 'output window, operand 0, single buffered']
    #allocation3 [shape = 's32[1]{0}', space=sflag, size = 0x4, scoped, tag = 'scoped memory for transformer_lm_forward.9']
    %10 = vsyncpa [#allocation3], 0
    // Predicated region
    $region2: #{transformer_lm_forward.9} parent=1 // pred_check
      _
    $region3: #{transformer_lm_forward.9} parent=1 // pred_check_branch
      %12 = sbr.rel (0) target = $region5
    $region4: #{transformer_lm_forward.9} parent=1 // pred_region
      _
    $region5: #{transformer_lm_forward.9} parent=1 // pred_fallthru
      _
    // Predicated region
    $region6: #{transformer_lm_forward.9} parent=1 // pred_check
      _
    $region7: #{transformer_lm_forward.9} parent=1 // pred_check_branch
      %14 = sbr.rel (0) target = $region9
    $region8: #{transformer_lm_forward.9} parent=1 // pred_region
      _
    $region9: #{transformer_lm_forward.9} parent=1 // pred_fallthru
      _
    // Predicated region
    $region10: #{transformer_lm_forward.9} parent=1 // pred_check
      _
    $region11: #{transformer_lm_forward.9} parent=1 // pred_check_branch
      %16 = sbr.rel (0) target = $region13
    $region12: #{transformer_lm_forward.9} parent=1 // pred_region
      _
    $region13: #{transformer_lm_forward.9} parent=1 // pred_fallthru
      _
    // Predicated region
    $region14: #{transformer_lm_forward.9} parent=1 // pred_check
      _
    $region15: #{transformer_lm_forward.9} parent=1 // pred_check_branch
      %18 = sbr.rel (0) target = $region17
    $region16: #{transformer_lm_forward.9} parent=1 // pred_region
      _
    $region17: #{transformer_lm_forward.9} parent=1 // pred_fallthru
      _
    // Predicated region
    $region18: #{transformer_lm_forward.9} parent=1 // pred_check
      _
    $region19: #{transformer_lm_forward.9} parent=1 // pred_check_branch
      %20 = sbr.rel (0) target = $region21
    $region20: #{transformer_lm_forward.9} parent=1 // pred_region
      _
    $region21: #{transformer_lm_forward.9} parent=1 // pred_fallthru
      _
    %v22 = vld [vmem:[%s0] sm:$0xff]
    %v23 = vld [vmem:[%s0 + $0x8] sm:$0xff]
    %vm24 = vcmask 261120
    %v25 = vsel %vm24, %v22, 0.0
    %26 = vadd.xlane.f32.xlu0 %v25
    %v27 = vpop.xlane.xlu0 %26
    %v28 = vsel %vm24, %v23, 0.0
    %29 = vadd.xlane.f32.xlu0 %v28
    %v30 = vpop.xlane.xlu0 %29
    %v31 = vrcp.pop 32.0
    %v32 = vmul.f32 32.0, %v31
    %v33 = vsub.f32 1.0, %v32
    %v34 = vmul.f32 %v31, %v33
    %v35 = vadd.f32 %v31, %v34
    %vm36 = vweird.f32 %v31
    %v37 = vsel %vm36, %v31, %v35
    %v38 = vmul.f32 %v27, %v37
    %v39 = vmul.f32 %v30, %v37
    %v40 = vsub.f32 %v22, %v38
    %v41 = vsub.f32 %v23, %v39
    %v42 = vmul.f32 %v40, %v40
    %v43 = vmul.f32 %v41, %v41
    %v44 = vsel %vm24, %v42, 0.0
    %45 = vadd.xlane.f32.xlu0 %v44
    %v46 = vpop.xlane.xlu0 %45
    %v47 = vsel %vm24, %v43, 0.0
    %48 = vadd.xlane.f32.xlu0 %v47
    %v49 = vpop.xlane.xlu0 %48
    %v50 = vmul.f32 %v46, %v37
    %v51 = vmul.f32 %v49, %v37
    %v52 = vadd.f32 %v50, 1e-05
    %v53 = vadd.f32 %v51, 1e-05
    %v54 = vrsqrt.pop %v52
    %v55 = vmul.f32 %v54, %v52
    %v56 = vmul.f32 %v55, %v54
    %v57 = vmul.f32 0.5, %v56
    %v58 = vsub.f32 1.5, %v57
    %v59 = vmul.f32 %v54, %v58
    %vm60 = vweird.f32 %v52
    %vm61 = vweird.f32 %v54
    %vm62 = vmor %vm60, %vm61
    %v63 = vsel %vm62, %v54, %v59
    %v64 = vrsqrt.pop %v53
    %v65 = vmul.f32 %v64, %v53
    %v66 = vmul.f32 %v65, %v64
    %v67 = vmul.f32 0.5, %v66
    %v68 = vsub.f32 1.5, %v67
    %v69 = vmul.f32 %v64, %v68
    %vm70 = vweird.f32 %v53
    %vm71 = vweird.f32 %v64
    %vm72 = vmor %vm70, %vm71
    %v73 = vsel %vm72, %v64, %v69
    %v74 = vmul.f32 %v40, %v63
    %v75 = vmul.f32 %v41, %v73
    %v76 = vld [vmem:[%s1] sm:$0x1]
    %v78 = vperm.slane %v76, 0
    %v80 = vmul.f32 %v74, %v78
    %v81 = vmul.f32 %v75, %v78
    %v82 = vld [vmem:[%s2] sm:$0x1]
    %v84 = vperm.slane %v82, 0
    %v86 = vadd.f32 %v80, %v84
    %v87 = vadd.f32 %v81, %v84
    %v88 = vpack.c.bf16 %v87, %v86
    %v89 = vld [vmem:[%s3] sm:$0xf]
    %v90 = vld [vmem:[%s3 + $0x4] sm:$0xf]
    %v91 = vld [vmem:[%s3 + $0x8] sm:$0xf]
    %v92 = vld [vmem:[%s3 + $0xc] sm:$0xf]
    %v93 = vld [vmem:[%s4] sm:$0x1]
    %v95 = vperm.slane %v93, 0
    %v101 = vunpack.c.l.b16 %v89
    %v102 = vunpack.c.l.b16 %v90
    %v103 = vunpack.c.l.b16 %v91
    %v104 = vunpack.c.l.b16 %v92
    %v105 = vpack.c.b16 %v102, %v101
    %v106 = vpack.c.b16 %v104, %v103
    %v110 = vsel %vm24, %v88, 0
    %112 = vmatpush.bf16.msra.mxu0 0
    %113 = vmatpush.bf16.msra.mxu0 0
    %114 = vmatpush.bf16.msra.mxu0 0
    %115 = vmatpush.bf16.msra.mxu0 0
    %116 = vmatpush.bf16.msra.mxu0 0
    %117 = vmatpush.bf16.msra.mxu0 0
    %118 = vmatpush.bf16.msra.mxu0 %v106
    %119 = vmatpush.bf16.msra.mxu0 %v105
    %120 = vmatmul.bf16.gmra.mxu0 %v110
    %v121 = vpop.f32.mrf.mxu0
    %v122 = vadd.f32 %v95, %v121
    %v123 = vpop.f32.mrf.mxu0
    %v124 = vadd.f32 %v95, %v123
    %125 = vdwg.mxu0
    %vm126 = vcmask 523264
    %127 = vst.msk [vmem:[#allocation2] sm:$0xff] %vm126, %v122
    %128 = vst.msk [vmem:[#allocation2 + $0x8] sm:$0xff] %vm126, %v124
    // Predicated region
    $region22: #{transformer_lm_forward.9} parent=1 // pred_check
      _
    $region23: #{transformer_lm_forward.9} parent=1 // pred_check_branch
      %130 = sbr.rel (0) target = $region25
    $region24: #{transformer_lm_forward.9} parent=1 // pred_region
      %132 = vsyncadd [#allocation3], 0
      %s133 = sshll.u32 [#allocation2], 4
      %s134 = int_to_ptr.vmem [resolvable:$true] %s133
      %s135 = sshll.u32 %s5, 4
      %s136 = int_to_ptr.hbm [resolvable:$true] %s135
      %141 = dma.vmem_to_hbm [thread:$0]  %s134, 256, %s136, [#allocation3], 128, 128, 8
    $region25: #{transformer_lm_forward.9} parent=1 // pred_fallthru
      _
    // Predicated region
    $region26: #{transformer_lm_forward.9} parent=1 // pred_check
      _
    $region27: #{transformer_lm_forward.9} parent=1 // pred_check_branch
      %143 = sbr.rel (0) target = $region29
    $region28: #{transformer_lm_forward.9} parent=1 // pred_region
      %145 = dma.done [#allocation3], 256
    $region29: #{transformer_lm_forward.9} parent=1 // pred_fallthru
      _
    %146 = vsyncpa [#allocation3], 1

// kernel: transformer_lm_forward.6
$region0: #{transformer_lm_forward.6}
  #allocation0 [shape = 'u32[]', space=smem, size = 0x4, offset = 0x4, fixed_abs, tag = 'smem constant byte address 0x4 - core index']
  #allocation1 [shape = 'u32[72,128]{1,0:T(1,128)}', space=vmem, size = 0x9000, scoped, tag = 'internal scratch']
  %s0 = inlined_call_operand.vmem [shape: f32[16,32], index: 0, kind: input, shape index: {}]
  %s1 = inlined_call_operand.vmem [shape: f32[1,32], index: 1, kind: input, shape index: {}]
  %s2 = inlined_call_operand.vmem [shape: f32[1,32], index: 2, kind: input, shape index: {}]
  %s3 = inlined_call_operand.vmem [shape: bf16[32,128], index: 3, kind: input, shape index: {}]
  %s4 = inlined_call_operand.vmem [shape: f32[1,128], index: 4, kind: input, shape index: {}]
  %s5 = inlined_call_operand.vmem [shape: bf16[128,32], index: 5, kind: input, shape index: {}]
  %s6 = inlined_call_operand.vmem [shape: f32[1,32], index: 6, kind: input, shape index: {}]
  %s7 = inlined_call_operand.vmem [shape: f32[16,32], index: 7, kind: output, shape index: {}]
  %s8 = sld [smem:[#allocation0]]
  $region38: #{transformer_lm_forward.6} parent=0
    _
  %s10 = ssub.s32 1, %s8
  %s11 = scalar_select 0, %s10, %s8
  // Predicated region
  $region2: #{transformer_lm_forward.6} parent=0 // pred_check
    _
  $region3: #{transformer_lm_forward.6} parent=0 // pred_check_branch
    %13 = sbr.rel (0) target = $region5
  $region4: #{transformer_lm_forward.6} parent=0 // pred_region
    _
  $region5: #{transformer_lm_forward.6} parent=0 // pred_fallthru
    _
  // Predicated region
  $region6: #{transformer_lm_forward.6} parent=0 // pred_check
    _
  $region7: #{transformer_lm_forward.6} parent=0 // pred_check_branch
    %15 = sbr.rel (0) target = $region9
  $region8: #{transformer_lm_forward.6} parent=0 // pred_region
    _
  $region9: #{transformer_lm_forward.6} parent=0 // pred_fallthru
    _
  // Predicated region
  $region10: #{transformer_lm_forward.6} parent=0 // pred_check
    _
  $region11: #{transformer_lm_forward.6} parent=0 // pred_check_branch
    %17 = sbr.rel (0) target = $region13
  $region12: #{transformer_lm_forward.6} parent=0 // pred_region
    _
  $region13: #{transformer_lm_forward.6} parent=0 // pred_fallthru
    _
  // Predicated region
  $region14: #{transformer_lm_forward.6} parent=0 // pred_check
    _
  $region15: #{transformer_lm_forward.6} parent=0 // pred_check_branch
    %19 = sbr.rel (0) target = $region17
  $region16: #{transformer_lm_forward.6} parent=0 // pred_region
    _
  $region17: #{transformer_lm_forward.6} parent=0 // pred_fallthru
    _
  // Predicated region
  $region18: #{transformer_lm_forward.6} parent=0 // pred_check
    _
  $region19: #{transformer_lm_forward.6} parent=0 // pred_check_branch
    %21 = sbr.rel (0) target = $region21
  $region20: #{transformer_lm_forward.6} parent=0 // pred_region
    _
  $region21: #{transformer_lm_forward.6} parent=0 // pred_fallthru
    _
  // Predicated region
  $region22: #{transformer_lm_forward.6} parent=0 // pred_check
    _
  $region23: #{transformer_lm_forward.6} parent=0 // pred_check_branch
    %23 = sbr.rel (0) target = $region25
  $region24: #{transformer_lm_forward.6} parent=0 // pred_region
    _
  $region25: #{transformer_lm_forward.6} parent=0 // pred_fallthru
    _
  // Predicated region
  $region26: #{transformer_lm_forward.6} parent=0 // pred_check
    _
  $region27: #{transformer_lm_forward.6} parent=0 // pred_check_branch
    %25 = sbr.rel (0) target = $region29
  $region28: #{transformer_lm_forward.6} parent=0 // pred_region
    _
  $region29: #{transformer_lm_forward.6} parent=0 // pred_fallthru
    _
  %v27 = vld [vmem:[%s0] sm:$0xff]
  %v28 = vld [vmem:[%s0 + $0x8] sm:$0xff]
  %vm29 = vcmask 261120
  %v30 = vsel %vm29, %v27, 0.0
  %31 = vadd.xlane.f32.xlu0 %v30
  %v32 = vpop.xlane.xlu0 %31
  %v33 = vsel %vm29, %v28, 0.0
  %34 = vadd.xlane.f32.xlu0 %v33
  %v35 = vpop.xlane.xlu0 %34
  %v36 = vrcp.pop 32.0
  %v37 = vmul.f32 32.0, %v36
  %v38 = vsub.f32 1.0, %v37
  %v39 = vmul.f32 %v36, %v38
  %v40 = vadd.f32 %v36, %v39
  %vm41 = vweird.f32 %v36
  %v42 = vsel %vm41, %v36, %v40
  %v43 = vmul.f32 %v32, %v42
  %v44 = vmul.f32 %v35, %v42
  %v45 = vsub.f32 %v27, %v43
  %v46 = vsub.f32 %v28, %v44
  %v47 = vmul.f32 %v45, %v45
  %v48 = vmul.f32 %v46, %v46
  %v49 = vsel %vm29, %v47, 0.0
  %50 = vadd.xlane.f32.xlu0 %v49
  %v51 = vpop.xlane.xlu0 %50
  %v52 = vsel %vm29, %v48, 0.0
  %53 = vadd.xlane.f32.xlu0 %v52
  %v54 = vpop.xlane.xlu0 %53
  %v55 = vmul.f32 %v51, %v42
  %v56 = vmul.f32 %v54, %v42
  %v57 = vadd.f32 %v55, 1e-05
  %v58 = vadd.f32 %v56, 1e-05
  %v59 = vrsqrt.pop %v57
  %v60 = vmul.f32 %v59, %v57
  %v61 = vmul.f32 %v60, %v59
  %v62 = vmul.f32 0.5, %v61
  %v63 = vsub.f32 1.5, %v62
  %v64 = vmul.f32 %v59, %v63
  %vm65 = vweird.f32 %v57
  %vm66 = vweird.f32 %v59
  %vm67 = vmor %vm65, %vm66
  %v68 = vsel %vm67, %v59, %v64
  %v69 = vrsqrt.pop %v58
  %v70 = vmul.f32 %v69, %v58
  %v71 = vmul.f32 %v70, %v69
  %v72 = vmul.f32 0.5, %v71
  %v73 = vsub.f32 1.5, %v72
  %v74 = vmul.f32 %v69, %v73
  %vm75 = vweird.f32 %v58
  %vm76 = vweird.f32 %v69
  %vm77 = vmor %vm75, %vm76
  %v78 = vsel %vm77, %v69, %v74
  %v79 = vmul.f32 %v45, %v68
  %v80 = vmul.f32 %v46, %v78
  %v81 = vld [vmem:[%s1] sm:$0x1]
  %v83 = vperm.slane %v81, 0
  %v85 = vmul.f32 %v79, %v83
  %v86 = vmul.f32 %v80, %v83
  %v87 = vld [vmem:[%s2] sm:$0x1]
  %v89 = vperm.slane %v87, 0
  %v91 = vadd.f32 %v85, %v89
  %v92 = vadd.f32 %v86, %v89
  %v93 = vpack.c.bf16 %v92, %v91
  %v94 = vld [vmem:[%s3] sm:$0xf]
  %v95 = vld [vmem:[%s3 + $0x4] sm:$0xf]
  %v96 = vld [vmem:[%s3 + $0x8] sm:$0xf]
  %v97 = vld [vmem:[%s3 + $0xc] sm:$0xf]
  %v98 = vld [vmem:[%s4] sm:$0x1]
  %v100 = vperm.slane %v98, 0
  %v106 = vunpack.c.l.b16 %v94
  %v107 = vunpack.c.l.b16 %v95
  %v108 = vunpack.c.l.b16 %v96
  %v109 = vunpack.c.l.b16 %v97
  %v110 = vpack.c.b16 %v107, %v106
  %v111 = vpack.c.b16 %v109, %v108
  %v115 = vsel %vm29, %v93, 0
  %117 = vmatpush.bf16.msra.mxu0 0
  %118 = vmatpush.bf16.msra.mxu0 0
  %119 = vmatpush.bf16.msra.mxu0 0
  %120 = vmatpush.bf16.msra.mxu0 0
  %121 = vmatpush.bf16.msra.mxu0 0
  %122 = vmatpush.bf16.msra.mxu0 0
  %123 = vmatpush.bf16.msra.mxu0 %v111
  %124 = vmatpush.bf16.msra.mxu0 %v110
  %125 = vmatmul.bf16.gmra.mxu0 %v115
  %v126 = vpop.f32.mrf.mxu0
  %v127 = vadd.f32 %v100, %v126
  %v128 = vpop.f32.mrf.mxu0
  %v129 = vadd.f32 %v100, %v128
  %130 = vdwg.mxu0
  %v131 = vmax.f32 %v127, 0.0
  %v132 = vmax.f32 %v129, 0.0
  %v133 = vpack.c.bf16 %v132, %v131
  %v134 = vld [vmem:[%s5] sm:$0xf]
  %v135 = vld [vmem:[%s5 + $0x4] sm:$0xf]
  %v136 = vld [vmem:[%s5 + $0x8] sm:$0xf]
  %v137 = vld [vmem:[%s5 + $0xc] sm:$0xf]
  %v138 = vld [vmem:[%s5 + $0x10] sm:$0xf]
  %v139 = vld [vmem:[%s5 + $0x14] sm:$0xf]
  %v140 = vld [vmem:[%s5 + $0x18] sm:$0xf]
  %v141 = vld [vmem:[%s5 + $0x1c] sm:$0xf]
  %v142 = vld [vmem:[%s5 + $0x20] sm:$0xf]
  %v143 = vld [vmem:[%s5 + $0x24] sm:$0xf]
  %v144 = vld [vmem:[%s5 + $0x28] sm:$0xf]
  %v145 = vld [vmem:[%s5 + $0x2c] sm:$0xf]
  %v146 = vld [vmem:[%s5 + $0x30] sm:$0xf]
  %v147 = vld [vmem:[%s5 + $0x34] sm:$0xf]
  %v148 = vld [vmem:[%s5 + $0x38] sm:$0xf]
  %v149 = vld [vmem:[%s5 + $0x3c] sm:$0xf]
  %v150 = vld [vmem:[%s6] sm:$0x1]
  %v152 = vperm.slane %v150, 0
  %v170 = vunpack.c.l.b16 %v134
  %v171 = vunpack.c.l.b16 %v135
  %v172 = vunpack.c.l.b16 %v136
  %v173 = vunpack.c.l.b16 %v137
  %v174 = vunpack.c.l.b16 %v138
  %v175 = vunpack.c.l.b16 %v139
  %v176 = vunpack.c.l.b16 %v140
  %v177 = vunpack.c.l.b16 %v141
  %v178 = vunpack.c.l.b16 %v142
  %v179 = vunpack.c.l.b16 %v143
  %v180 = vunpack.c.l.b16 %v144
  %v181 = vunpack.c.l.b16 %v145
  %v182 = vunpack.c.l.b16 %v146
  %v183 = vunpack.c.l.b16 %v147
  %v184 = vunpack.c.l.b16 %v148
  %v185 = vunpack.c.l.b16 %v149
  %v186 = vpack.c.b16 %v171, %v170
  %v187 = vpack.c.b16 %v173, %v172
  %v188 = vpack.c.b16 %v175, %v174
  %v189 = vpack.c.b16 %v177, %v176
  %v190 = vpack.c.b16 %v179, %v178
  %v191 = vpack.c.b16 %v181, %v180
  %v192 = vpack.c.b16 %v183, %v182
  %v193 = vpack.c.b16 %v185, %v184
  %202 = vmatpush.bf16.msra.mxu0 %v193
  %203 = vmatpush.bf16.msra.mxu0 %v192
  %204 = vmatpush.bf16.msra.mxu0 %v191
  %205 = vmatpush.bf16.msra.mxu0 %v190
  %206 = vmatpush.bf16.msra.mxu0 %v189
  %207 = vmatpush.bf16.msra.mxu0 %v188
  %208 = vmatpush.bf16.msra.mxu0 %v187
  %209 = vmatpush.bf16.msra.mxu0 %v186
  %210 = vmatmul.bf16.gmra.mxu0 %v133
  %v211 = vpop.f32.mrf.mxu0
  %v212 = vadd.f32 %v152, %v211
  %v213 = vpop.f32.mrf.mxu0
  %v214 = vadd.f32 %v152, %v213
  %215 = vdwg.mxu0
  %v216 = vadd.f32 %v27, %v212
  %v217 = vadd.f32 %v28, %v214
  %218 = vst.msk [vmem:[%s7] sm:$0xff] %vm29, %v216
  %219 = vst.msk [vmem:[%s7 + $0x8] sm:$0xff] %vm29, %v217
  // Predicated region
  $region30: #{transformer_lm_forward.6} parent=0 // pred_check
    _
  $region31: #{transformer_lm_forward.6} parent=0 // pred_check_branch
    %221 = sbr.rel (0) target = $region33
  $region32: #{transformer_lm_forward.6} parent=0 // pred_region
    _
  $region33: #{transformer_lm_forward.6} parent=0 // pred_fallthru
    _
  // Predicated region
  $region34: #{transformer_lm_forward.6} parent=0 // pred_check
    _
  $region35: #{transformer_lm_forward.6} parent=0 // pred_check_branch
    %223 = sbr.rel (0) target = $region37
  $region36: #{transformer_lm_forward.6} parent=0 // pred_region
    _
  $region37: #{transformer_lm_forward.6} parent=0 // pred_fallthru
    _

// kernel: transformer_lm_forward.5
$region0: #{transformer_lm_forward.5}
  #allocation0 [shape = 'u32[]', space=smem, size = 0x4, offset = 0x4, fixed_abs, tag = 'smem constant byte address 0x4 - core index']
  #allocation1 [shape = 'u32[72,128]{1,0:T(1,128)}', space=vmem, size = 0x9000, scoped, tag = 'internal scratch']
  %s0 = inlined_call_operand.vmem [shape: f32[2,8,32], index: 0, kind: input, shape index: {}]
  %s1 = inlined_call_operand.vmem [shape: f32[1,32], index: 1, kind: input, shape index: {}]
  %s2 = inlined_call_operand.vmem [shape: f32[1,32], index: 2, kind: input, shape index: {}]
  %s3 = inlined_call_operand.vmem [shape: bf16[32,192], index: 3, kind: input, shape index: {}]
  %s4 = inlined_call_operand.vmem [shape: bf16[128,32], index: 4, kind: input, shape index: {}]
  %s5 = inlined_call_operand.vmem [shape: f32[1,32], index: 5, kind: input, shape index: {}]
  %s6 = inlined_call_operand.vmem [shape: f32[2,8,32], index: 6, kind: output, shape index: {}]
  %s7 = sld [smem:[#allocation0]]
  $region57: #{transformer_lm_forward.5} parent=0
    _
  %s9 = ssub.s32 1, %s7
  %s10 = scalar_select 0, %s9, %s7
  loop: start=0, step=1, limit=4
  $region2: #{transformer_lm_forward.5} parent=0 // loop_pre_header
    _
  $region3: #{transformer_lm_forward.5} parent=0 // loop_header
    %s12 = sphi 0, %s16
    %p13 = scmp.ge.s32.totalorder %s12, 4
    %s22 = sphi 0, %s24
    %s25 = sphi 0, %s22
    %s26 = sphi 0, %s25
    %s42 = sphi 0, %s26
    %s46 = sphi 0, %s46
    %s48 = sphi 0, %s46
    %s49 = sphi 0, %s48
    %s63 = sphi 0, %s49
    %s67 = sphi 0, %s67
    %s69 = sphi 0, %s67
    %s70 = sphi 0, %s69
    %s84 = sphi 0, %s70
    %s88 = sphi 0, %s88
    %s90 = sphi 0, %s88
    %s91 = sphi 0, %s90
    %s105 = sphi 0, %s91
    %s109 = sphi 0, %s109
    %s111 = sphi 0, %s109
    %s112 = sphi 0, %s111
    %s126 = sphi 0, %s112
    %s130 = sphi 0, %s130
    %s132 = sphi 0, %s130
    %s133 = sphi 0, %s132
    %s147 = sphi 0, %s133
    %s153 = sphi 0, %s155
    %s156 = sphi 0, %s153
    %s157 = sphi 0, %s156
    %s173 = sphi 0, %s157
  $region4: #{transformer_lm_forward.5} parent=0 // loop_header_branch
    %15 = sbr.rel (%p13) target = $region8
  $region5: #{transformer_lm_forward.5} parent=0 // loop_body
    %s17 = ssub.s32 %s12, 1
    %s18 = ssub.s32 %s12, 2
    %s19 = sadd.s32 %s12, 1
    %s20 = ssub.s32 %s12, %s19
    %p21 = scmp.eq.s32.totalorder %s20, 0
    %s23 = sadd.s32 %s22, 1
    %s24 = scalar_select %p21, %s22, %s23
    %p27 = pneg %p21
    %p28 = scmp.eq.s32.totalorder %s12, 1
    %p29 = por %p27, %p28
    %p30 = scmp.ne.s32.totalorder %s22, %s25
    %p31 = scmp.eq.s32.totalorder %s12, 0
    %p32 = por %p30, %p31
    %p33 = scmp.ne.s32.totalorder %s22, %s25
    %p34 = scmp.eq.s32.totalorder %s17, 1
    %p35 = por %p33, %p34
    %p36 = scmp.ne.s32.totalorder %s25, %s26
    %p37 = scmp.eq.s32.totalorder %s17, 0
    %p38 = por %p36, %p37
    %p39 = scmp.ne.s32.totalorder %s25, %s26
    %p40 = scmp.eq.s32.totalorder %s18, 1
    %p41 = por %p39, %p40
    %p43 = scmp.ne.s32.totalorder %s26, %s42
    %p44 = scmp.eq.s32.totalorder %s18, 0
    %p45 = por %p43, %p44
    %s47 = sadd.s32 %s46, 1
    %p50 = scmp.eq.s32.totalorder %s12, 1
    %p51 = scmp.ne.s32.totalorder %s46, %s48
    %p52 = scmp.eq.s32.totalorder %s12, 0
    %p53 = por %p51, %p52
    %p54 = scmp.ne.s32.totalorder %s46, %s48
    %p55 = scmp.eq.s32.totalorder %s17, 1
    %p56 = por %p54, %p55
    %p57 = scmp.ne.s32.totalorder %s48, %s49
    %p58 = scmp.eq.s32.totalorder %s17, 0
    %p59 = por %p57, %p58
    %p60 = scmp.ne.s32.totalorder %s48, %s49
    %p61 = scmp.eq.s32.totalorder %s18, 1
    %p62 = por %p60, %p61
    %p64 = scmp.ne.s32.totalorder %s49, %s63
    %p65 = scmp.eq.s32.totalorder %s18, 0
    %p66 = por %p64, %p65
    %s68 = sadd.s32 %s67, 1
    %p71 = scmp.eq.s32.totalorder %s12, 1
    %p72 = scmp.ne.s32.totalorder %s67, %s69
    %p73 = scmp.eq.s32.totalorder %s12, 0
    %p74 = por %p72, %p73
    %p75 = scmp.ne.s32.totalorder %s67, %s69
    %p76 = scmp.eq.s32.totalorder %s17, 1
    %p77 = por %p75, %p76
    %p78 = scmp.ne.s32.totalorder %s69, %s70
    %p79 = scmp.eq.s32.totalorder %s17, 0
    %p80 = por %p78, %p79
    %p81 = scmp.ne.s32.totalorder %s69, %s70
    %p82 = scmp.eq.s32.totalorder %s18, 1
    %p83 = por %p81, %p82
    %p85 = scmp.ne.s32.totalorder %s70, %s84
    %p86 = scmp.eq.s32.totalorder %s18, 0
    %p87 = por %p85, %p86
    %s89 = sadd.s32 %s88, 1
    %p92 = scmp.eq.s32.totalorder %s12, 1
    %p93 = scmp.ne.s32.totalorder %s88, %s90
    %p94 = scmp.eq.s32.totalorder %s12, 0
    %p95 = por %p93, %p94
    %p96 = scmp.ne.s32.totalorder %s88, %s90
    %p97 = scmp.eq.s32.totalorder %s17, 1
    %p98 = por %p96, %p97
    %p99 = scmp.ne.s32.totalorder %s90, %s91
    %p100 = scmp.eq.s32.totalorder %s17, 0
    %p101 = por %p99, %p100
    %p102 = scmp.ne.s32.totalorder %s90, %s91
    %p103 = scmp.eq.s32.totalorder %s18, 1
    %p104 = por %p102, %p103
    %p106 = scmp.ne.s32.totalorder %s91, %s105
    %p107 = scmp.eq.s32.totalorder %s18, 0
    %p108 = por %p106, %p107
    %s110 = sadd.s32 %s109, 1
    %p113 = scmp.eq.s32.totalorder %s12, 1
    %p114 = scmp.ne.s32.totalorder %s109, %s111
    %p115 = scmp.eq.s32.totalorder %s12, 0
    %p116 = por %p114, %p115
    %p117 = scmp.ne.s32.totalorder %s109, %s111
    %p118 = scmp.eq.s32.totalorder %s17, 1
    %p119 = por %p117, %p118
    %p120 = scmp.ne.s32.totalorder %s111, %s112
    %p121 = scmp.eq.s32.totalorder %s17, 0
    %p122 = por %p120, %p121
    %p123 = scmp.ne.s32.totalorder %s111, %s112
    %p124 = scmp.eq.s32.totalorder %s18, 1
    %p125 = por %p123, %p124
    %p127 = scmp.ne.s32.totalorder %s112, %s126
    %p128 = scmp.eq.s32.totalorder %s18, 0
    %p129 = por %p127, %p128
    %s131 = sadd.s32 %s130, 1
    %p134 = scmp.eq.s32.totalorder %s12, 1
    %p135 = scmp.ne.s32.totalorder %s130, %s132
    %p136 = scmp.eq.s32.totalorder %s12, 0
    %p137 = por %p135, %p136
    %p138 = scmp.ne.s32.totalorder %s130, %s132
    %p139 = scmp.eq.s32.totalorder %s17, 1
    %p140 = por %p138, %p139
    %p141 = scmp.ne.s32.totalorder %s132, %s133
    %p142 = scmp.eq.s32.totalorder %s17, 0
    %p143 = por %p141, %p142
    %p144 = scmp.ne.s32.totalorder %s132, %s133
    %p145 = scmp.eq.s32.totalorder %s18, 1
    %p146 = por %p144, %p145
    %p148 = scmp.ne.s32.totalorder %s133, %s147
    %p149 = scmp.eq.s32.totalorder %s18, 0
    %p150 = por %p148, %p149
    %s151 = ssub.s32 %s12, %s19
    %p152 = scmp.eq.s32.totalorder %s151, 0
    %s154 = sadd.s32 %s153, 1
    %s155 = scalar_select %p152, %s153, %s154
    %p158 = pneg %p152
    %p159 = scmp.eq.s32.totalorder %s12, 1
    %p160 = por %p158, %p159
    %p161 = scmp.ne.s32.totalorder %s153, %s156
    %p162 = scmp.eq.s32.totalorder %s12, 0
    %p163 = por %p161, %p162
    %p164 = scmp.ne.s32.totalorder %s153, %s156
    %p165 = scmp.eq.s32.totalorder %s17, 1
    %p166 = por %p164, %p165
    %p167 = scmp.ne.s32.totalorder %s156, %s157
    %p168 = scmp.eq.s32.totalorder %s17, 0
    %p169 = por %p167, %p168
    %p170 = scmp.ne.s32.totalorder %s156, %s157
    %p171 = scmp.eq.s32.totalorder %s18, 1
    %p172 = por %p170, %p171
    %p174 = scmp.ne.s32.totalorder %s157, %s173
    %p175 = scmp.eq.s32.totalorder %s18, 0
    %p176 = por %p174, %p175
    %p177 = scmp.le.s32.totalorder 1, %s12
    %p178 = scmp.lt.s32.totalorder %s12, 3
    %p179 = pnand %p177, %p178
    %p180 = pneg %p179
    // Predicated region
    $region9: #{transformer_lm_forward.5} parent=5 // pred_check
      _
    $region10: #{transformer_lm_forward.5} parent=5 // pred_check_branch
      %182 = sbr.rel (%p179) target = $region12
    $region11: #{transformer_lm_forward.5} parent=5 // pred_region
      %s183 = ssub.s32 %s12, 1
      // Predicated region
      $region13: #{transformer_lm_forward.5} parent=11 // pred_check
        %p184 = pneg %p59
      $region14: #{transformer_lm_forward.5} parent=11 // pred_check_branch
        %186 = sbr.rel (%p184) target = $region16
      $region15: #{transformer_lm_forward.5} parent=11 // pred_region
        _
      $region16: #{transformer_lm_forward.5} parent=11 // pred_fallthru
        _
      // Predicated region
      $region17: #{transformer_lm_forward.5} parent=11 // pred_check
        %p187 = pneg %p80
      $region18: #{transformer_lm_forward.5} parent=11 // pred_check_branch
        %189 = sbr.rel (%p187) target = $region20
      $region19: #{transformer_lm_forward.5} parent=11 // pred_region
        _
      $region20: #{transformer_lm_forward.5} parent=11 // pred_fallthru
        _
      // Predicated region
      $region21: #{transformer_lm_forward.5} parent=11 // pred_check
        %p190 = pneg %p101
      $region22: #{transformer_lm_forward.5} parent=11 // pred_check_branch
        %192 = sbr.rel (%p190) target = $region24
      $region23: #{transformer_lm_forward.5} parent=11 // pred_region
        _
      $region24: #{transformer_lm_forward.5} parent=11 // pred_fallthru
        _
      // Predicated region
      $region25: #{transformer_lm_forward.5} parent=11 // pred_check
        %p193 = pneg %p122
      $region26: #{transformer_lm_forward.5} parent=11 // pred_check_branch
        %195 = sbr.rel (%p193) target = $region28
      $region27: #{transformer_lm_forward.5} parent=11 // pred_region
        _
      $region28: #{transformer_lm_forward.5} parent=11 // pred_fallthru
        _
      // Predicated region
      $region29: #{transformer_lm_forward.5} parent=11 // pred_check
        %p196 = pneg %p143
      $region30: #{transformer_lm_forward.5} parent=11 // pred_check_branch
        %198 = sbr.rel (%p196) target = $region32
      $region31: #{transformer_lm_forward.5} parent=11 // pred_region
        _
      $region32: #{transformer_lm_forward.5} parent=11 // pred_fallthru
        _
    $region12: #{transformer_lm_forward.5} parent=5 // pred_fallthru
      _
    %p199 = scmp.lt.s32.totalorder %s12, 2
    // Predicated region
    $region33: #{transformer_lm_forward.5} parent=5 // pred_check
      %p200 = pneg %p199
    $region34: #{transformer_lm_forward.5} parent=5 // pred_check_branch
      %202 = sbr.rel (%p200) target = $region36
    $region35: #{transformer_lm_forward.5} parent=5 // pred_region
      // Predicated region
      $region37: #{transformer_lm_forward.5} parent=35 // pred_check
        %p203 = pneg %p32
      $region38: #{transformer_lm_forward.5} parent=35 // pred_check_branch
        %205 = sbr.rel (%p203) target = $region40
      $region39: #{transformer_lm_forward.5} parent=35 // pred_region
        %p206 = scmp.lt.s32.totalorder %s12, 1
        %s207 = scalar_select %p206, %s12, 1
        %s208 = smul.addr %s207, 8
        %s209 = scalar_lea.vmem %s0, %s208
      $region40: #{transformer_lm_forward.5} parent=35 // pred_fallthru
        _
    $region36: #{transformer_lm_forward.5} parent=5 // pred_fallthru
      _
    %p210 = scmp.le.s32.totalorder 1, %s12
    %p211 = scmp.lt.s32.totalorder %s12, 3
    %p212 = pnand %p210, %p211
    %p213 = pneg %p212
    // Predicated region
    $region41: #{transformer_lm_forward.5} parent=5 // pred_check
      _
    $region42: #{transformer_lm_forward.5} parent=5 // pred_check_branch
      %215 = sbr.rel (%p212) target = $region44
    $region43: #{transformer_lm_forward.5} parent=5 // pred_region
      %s216 = ssub.s32 %s12, 1
      %p217 = scmp.lt.s32.totalorder %s17, 1
      %s218 = scalar_select %p217, %s17, 1
      %s219 = smul.addr %s218, 8
      %s220 = scalar_lea.vmem %s0, %s219
      %p221 = pneg %p38
      %p222 = pneg %p35
      %p223 = pneg %p59
      %p224 = pneg %p56
      %p225 = pneg %p80
      %p226 = pneg %p77
      %p227 = pneg %p101
      %p228 = pneg %p98
      %p229 = pneg %p122
      %p230 = pneg %p119
      %p231 = pneg %p143
      %p232 = pneg %p140
      %p233 = pneg %p169
      %p234 = pneg %p166
      %p235 = scmp.lt.s32.totalorder %s17, 1
      %s236 = scalar_select %p235, %s17, 1
      %s237 = smul.addr %s236, 8
      %s238 = scalar_lea.vmem %s6, %s237
      %p239 = scmp.lt.s32.totalorder %s17, 1
      %s240 = scalar_select %p239, %s17, 1
      %s241 = smul.addr %s240, 8
      %s242 = scalar_lea.vmem %s0, %s241
      %p243 = scmp.lt.s32.totalorder %s17, 1
      %s244 = scalar_select %p243, %s17, 1
      %s245 = smul.addr %s244, 8
      %s246 = scalar_lea.vmem %s6, %s245
      %v248 = vld [vmem:[%s242] sm:$0xff]
      %vm249 = vcmask 261120
      %v250 = vsel %vm249, %v248, 0.0
      %251 = vadd.xlane.f32.xlu0 %v250
      %v252 = vpop.xlane.xlu0 %251
      %v253 = vrcp.pop 32.0
      %v254 = vmul.f32 32.0, %v253
      %v255 = vsub.f32 1.0, %v254
      %v256 = vmul.f32 %v253, %v255
      %v257 = vadd.f32 %v253, %v256
      %vm258 = vweird.f32 %v253
      %v259 = vsel %vm258, %v253, %v257
      %v260 = vmul.f32 %v252, %v259
      %v261 = vsub.f32 %v248, %v260
      %v262 = vmul.f32 %v261, %v261
      %v263 = vsel %vm249, %v262, 0.0
      %264 = vadd.xlane.f32.xlu0 %v263
      %v265 = vpop.xlane.xlu0 %264
      %v266 = vmul.f32 %v265, %v259
      %v267 = vadd.f32 %v266, 1e-05
      %v268 = vrsqrt.pop %v267
      %v269 = vmul.f32 %v268, %v267
      %v270 = vmul.f32 %v269, %v268
      %v271 = vmul.f32 0.5, %v270
      %v272 = vsub.f32 1.5, %v271
      %v273 = vmul.f32 %v268, %v272
      %vm274 = vweird.f32 %v267
      %vm275 = vweird.f32 %v268
      %vm276 = vmor %vm274, %vm275
      %v277 = vsel %vm276, %v268, %v273
      %v278 = vmul.f32 %v261, %v277
      %v279 = vld [vmem:[%s1] sm:$0x1]
      %v281 = vperm.slane %v279, 0
      %v283 = vmul.f32 %v278, %v281
      %v284 = vld [vmem:[%s2] sm:$0x1]
      %v286 = vperm.slane %v284, 0
      %v288 = vadd.f32 %v283, %v286
      %v289 = vpack.c.bf16 %v288, %v288
      %v290 = vld [vmem:[%s3] sm:$0xff]
      %v291 = vld [vmem:[%s3 + $0x8] sm:$0xff]
      %v292 = vld [vmem:[%s3 + $0x10] sm:$0xff]
      %v293 = vld [vmem:[%s3 + $0x18] sm:$0xff]
      %v298 = vunpack.c.l.b16 %v290
      %v299 = vunpack.c.h.b16 %v290
      %v300 = vunpack.c.l.b16 %v291
      %v301 = vunpack.c.h.b16 %v291
      %v302 = vunpack.c.l.b16 %v292
      %v303 = vunpack.c.h.b16 %v292
      %v304 = vunpack.c.l.b16 %v293
      %v305 = vunpack.c.h.b16 %v293
      %v306 = vpack.c.b16 %v300, %v298
      %v307 = vpack.c.b16 %v301, %v299
      %v308 = vpack.c.b16 %v304, %v302
      %v309 = vpack.c.b16 %v305, %v303
      %v315 = vsel %vm249, %v289, 0
      %317 = vmatpush.bf16.msra.mxu0 0
      %318 = vmatpush.bf16.msra.mxu0 0
      %319 = vmatpush.bf16.msra.mxu0 0
      %320 = vmatpush.bf16.msra.mxu0 0
      %321 = vmatpush.bf16.msra.mxu0 0
      %322 = vmatpush.bf16.msra.mxu0 0
      %323 = vmatpush.bf16.msra.mxu0 %v308
      %324 = vmatpush.bf16.msra.mxu0 %v306
      %325 = vmatmul.bf16.gmra.mxu0 %v315
      %v326 = vpop.f32.mrf.mxu0
      %v327 = vadd.f32 0.0, %v326
      %v328 = vpop.f32.mrf.mxu0
      %329 = vdwg.mxu0
      %330 = vmatpush.bf16.msra.mxu0 0
      %331 = vmatpush.bf16.msra.mxu0 0
      %332 = vmatpush.bf16.msra.mxu0 0
      %333 = vmatpush.bf16.msra.mxu0 0
      %334 = vmatpush.bf16.msra.mxu0 0
      %335 = vmatpush.bf16.msra.mxu0 0
      %336 = vmatpush.bf16.msra.mxu0 %v309
      %337 = vmatpush.bf16.msra.mxu0 %v307
      %338 = vmatmul.bf16.gmra.mxu0 %v315
      %v339 = vpop.f32.mrf.mxu0
      %v340 = vadd.f32 0.0, %v339
      %v341 = vpop.f32.mrf.mxu0
      %342 = vdwg.mxu0
      %v343 = vlaneseq
      %v344 = vshrl.u32 %v343, 7
      %v345 = vlaneseq
      %v346 = vand.u32 %v345, 127
      %vm347 = vcmp.le.s32.totalorder %v346, %v344
      %v348 = vld [vmem:[%s4] sm:$0xf]
      %v349 = vld [vmem:[%s4 + $0x4] sm:$0xf]
      %v350 = vld [vmem:[%s4 + $0x8] sm:$0xf]
      %v351 = vld [vmem:[%s4 + $0xc] sm:$0xf]
      %v352 = vld [vmem:[%s4 + $0x10] sm:$0xf]
      %v353 = vld [vmem:[%s4 + $0x14] sm:$0xf]
      %v354 = vld [vmem:[%s4 + $0x18] sm:$0xf]
      %v355 = vld [vmem:[%s4 + $0x1c] sm:$0xf]
      %v356 = vld [vmem:[%s4 + $0x20] sm:$0xf]
      %v357 = vld [vmem:[%s4 + $0x24] sm:$0xf]
      %v358 = vld [vmem:[%s4 + $0x28] sm:$0xf]
      %v359 = vld [vmem:[%s4 + $0x2c] sm:$0xf]
      %v360 = vld [vmem:[%s4 + $0x30] sm:$0xf]
      %v361 = vld [vmem:[%s4 + $0x34] sm:$0xf]
      %v362 = vld [vmem:[%s4 + $0x38] sm:$0xf]
      %v363 = vld [vmem:[%s4 + $0x3c] sm:$0xf]
      %v364 = vpack.c.bf16 %v327, %v327
      %366 = vrot.lane.b32.xlu0 %v364, 96
      %v367 = vpop.permute.xlu0 %366
      %vm368 = vcmask 64512
      %v370 = vsel %vm368, %v364, 0
      %v373 = vsel %vm368, %v367, 0
      %375 = vmatpush.bf16.xpose.msra.mxu0 0
      %376 = vmatpush.bf16.xpose.msra.mxu0 0
      %377 = vmatpush.bf16.xpose.msra.mxu0 0
      %378 = vmatpush.bf16.xpose.msra.mxu0 0
      %379 = vmatpush.bf16.xpose.msra.mxu0 0
      %380 = vmatpush.bf16.xpose.msra.mxu0 0
      %381 = vmatpush.bf16.xpose.msra.mxu0 0
      %382 = vmatpush.bf16.xpose.msra.mxu0 %v373
      %383 = vmatmul.bf16.gmra.mxu0 %v370
      %v384 = vpop.f32.mrf.mxu0
      %v385 = vadd.f32 0.0, %v384
      %v386 = vpop.f32.mrf.mxu0
      %387 = vdwg.mxu0
      %v388 = vmul.f32 %v385, 0.35355338
      %v389 = vsel %vm347, %v388, -1e+30
      %v390 = vsel %vm368, %v389, -inf
      %391 = vmax.xlane.f32.xlu0 %v390
      %v392 = vpop.xlane.xlu0 %391
      %v393 = vsub.f32 %v389, %v392
      %v394 = vmul.f32 %v393, 1.442695
      %v395 = vpow.pop %v394
      %v396 = vsel %vm368, %v395, 0.0
      %397 = vadd.xlane.f32.xlu0 %v396
      %v398 = vpop.xlane.xlu0 %397
      %v399 = vrcp.pop %v398
      %v400 = vmul.f32 %v395, %v399
      %v401 = vpack.c.bf16 %v400, %v400
      %402 = vrot.lane.b32.xlu0 %v364, 64
      %v403 = vpop.permute.xlu0 %402
      %v405 = vsel %vm368, %v401, 0
      %vm407 = vcmask 1043456
      %v409 = vsel %vm407, %v403, 0
      %411 = vmatpush.bf16.msra.mxu0 0
      %412 = vmatpush.bf16.msra.mxu0 0
      %413 = vmatpush.bf16.msra.mxu0 0
      %414 = vmatpush.bf16.msra.mxu0 0
      %415 = vmatpush.bf16.msra.mxu0 0
      %416 = vmatpush.bf16.msra.mxu0 0
      %417 = vmatpush.bf16.msra.mxu0 0
      %418 = vmatpush.bf16.msra.mxu0 %v409
      %419 = vmatmul.bf16.gmra.mxu0 %v405
      %v420 = vpop.f32.mrf.mxu0
      %v421 = vadd.f32 0.0, %v420
      %v422 = vpop.f32.mrf.mxu0
      %423 = vdwg.mxu0
      %v424 = vpack.c.bf16 %v421, %v421
      %425 = vrot.lane.b32.xlu0 %v364, 120
      %v426 = vpop.permute.xlu0 %425
      %427 = vrot.lane.b32.xlu0 %v364, 88
      %v428 = vpop.permute.xlu0 %427
      %v430 = vsel %vm368, %v426, 0
      %v433 = vsel %vm368, %v428, 0
      %435 = vmatpush.bf16.xpose.msra.mxu0 0
      %436 = vmatpush.bf16.xpose.msra.mxu0 0
      %437 = vmatpush.bf16.xpose.msra.mxu0 0
      %438 = vmatpush.bf16.xpose.msra.mxu0 0
      %439 = vmatpush.bf16.xpose.msra.mxu0 0
      %440 = vmatpush.bf16.xpose.msra.mxu0 0
      %441 = vmatpush.bf16.xpose.msra.mxu0 0
      %442 = vmatpush.bf16.xpose.msra.mxu0 %v433
      %443 = vmatmul.bf16.gmra.mxu0 %v430
      %v444 = vpop.f32.mrf.mxu0
      %v445 = vadd.f32 0.0, %v444
      %v446 = vpop.f32.mrf.mxu0
      %447 = vdwg.mxu0
      %v448 = vmul.f32 %v445, 0.35355338
      %v449 = vsel %vm347, %v448, -1e+30
      %v450 = vsel %vm368, %v449, -inf
      %451 = vmax.xlane.f32.xlu0 %v450
      %v452 = vpop.xlane.xlu0 %451
      %v453 = vsub.f32 %v449, %v452
      %v454 = vmul.f32 %v453, 1.442695
      %v455 = vpow.pop %v454
      %v456 = vsel %vm368, %v455, 0.0
      %457 = vadd.xlane.f32.xlu0 %v456
      %v458 = vpop.xlane.xlu0 %457
      %v459 = vrcp.pop %v458
      %v460 = vmul.f32 %v455, %v459
      %v461 = vpack.c.bf16 %v460, %v460
      %462 = vrot.lane.b32.xlu0 %v364, 32
      %v463 = vpop.permute.xlu0 %462
      %v465 = vsel %vm368, %v461, 0
      %v468 = vsel %vm407, %v463, 0
      %470 = vmatpush.bf16.msra.mxu0 0
      %471 = vmatpush.bf16.msra.mxu0 0
      %472 = vmatpush.bf16.msra.mxu0 0
      %473 = vmatpush.bf16.msra.mxu0 0
      %474 = vmatpush.bf16.msra.mxu0 0
      %475 = vmatpush.bf16.msra.mxu0 0
      %476 = vmatpush.bf16.msra.mxu0 0
      %477 = vmatpush.bf16.msra.mxu0 %v468
      %478 = vmatmul.bf16.gmra.mxu0 %v465
      %v479 = vpop.f32.mrf.mxu0
      %v480 = vadd.f32 0.0, %v479
      %v481 = vpop.f32.mrf.mxu0
      %482 = vdwg.mxu0
      %v483 = vpack.c.bf16 %v480, %v480
      %v488 = vunpack.c.l.b16 %v352
      %v489 = vunpack.c.l.b16 %v353
      %v490 = vunpack.c.l.b16 %v354
      %v491 = vunpack.c.l.b16 %v355
      %v492 = vpack.c.b16 %v489, %v488
      %v493 = vpack.c.b16 %v491, %v490
      %v497 = vsel %vm249, %v483, 0
      %499 = vmatpush.bf16.msra.mxu0 0
      %500 = vmatpush.bf16.msra.mxu0 0
      %501 = vmatpush.bf16.msra.mxu0 0
      %502 = vmatpush.bf16.msra.mxu0 0
      %503 = vmatpush.bf16.msra.mxu0 0
      %504 = vmatpush.bf16.msra.mxu0 0
      %505 = vmatpush.bf16.msra.mxu0 %v493
      %506 = vmatpush.bf16.msra.mxu0 %v492
      %507 = vmatmul.bf16.gmra.mxu0 %v497
      %v508 = vpop.f32.mrf.mxu0
      %v509 = vadd.f32 0.0, %v508
      %v510 = vpop.f32.mrf.mxu0
      %511 = vdwg.mxu0
      %v516 = vunpack.c.l.b16 %v348
      %v517 = vunpack.c.l.b16 %v349
      %v518 = vunpack.c.l.b16 %v350
      %v519 = vunpack.c.l.b16 %v351
      %v520 = vpack.c.b16 %v517, %v516
      %v521 = vpack.c.b16 %v519, %v518
      %v525 = vsel %vm249, %v424, 0
      %527 = vmatpush.bf16.msra.mxu0 0
      %528 = vmatpush.bf16.msra.mxu0 0
      %529 = vmatpush.bf16.msra.mxu0 0
      %530 = vmatpush.bf16.msra.mxu0 0
      %531 = vmatpush.bf16.msra.mxu0 0
      %532 = vmatpush.bf16.msra.mxu0 0
      %533 = vmatpush.bf16.msra.mxu0 %v521
      %534 = vmatpush.bf16.msra.mxu0 %v520
      %535 = vmatmul.bf16.gmra.mxu0 %v525
      %v536 = vpop.f32.mrf.mxu0
      %v537 = vadd.f32 %v509, %v536
      %v538 = vpop.f32.mrf.mxu0
      %539 = vdwg.mxu0
      %v540 = vpack.c.bf16 %v340, %v340
      %541 = vrot.lane.b32.xlu0 %v364, 112
      %v542 = vpop.permute.xlu0 %541
      %543 = vrot.lane.b32.xlu0 %v364, 80
      %v544 = vpop.permute.xlu0 %543
      %v546 = vsel %vm368, %v542, 0
      %v549 = vsel %vm368, %v544, 0
      %551 = vmatpush.bf16.xpose.msra.mxu0 0
      %552 = vmatpush.bf16.xpose.msra.mxu0 0
      %553 = vmatpush.bf16.xpose.msra.mxu0 0
      %554 = vmatpush.bf16.xpose.msra.mxu0 0
      %555 = vmatpush.bf16.xpose.msra.mxu0 0
      %556 = vmatpush.bf16.xpose.msra.mxu0 0
      %557 = vmatpush.bf16.xpose.msra.mxu0 0
      %558 = vmatpush.bf16.xpose.msra.mxu0 %v549
      %559 = vmatmul.bf16.gmra.mxu0 %v546
      %v560 = vpop.f32.mrf.mxu0
      %v561 = vadd.f32 0.0, %v560
      %v562 = vpop.f32.mrf.mxu0
      %563 = vdwg.mxu0
      %v564 = vmul.f32 %v561, 0.35355338
      %v565 = vsel %vm347, %v564, -1e+30
      %v566 = vsel %vm368, %v565, -inf
      %567 = vmax.xlane.f32.xlu0 %v566
      %v568 = vpop.xlane.xlu0 %567
      %v569 = vsub.f32 %v565, %v568
      %v570 = vmul.f32 %v569, 1.442695
      %v571 = vpow.pop %v570
      %v572 = vsel %vm368, %v571, 0.0
      %573 = vadd.xlane.f32.xlu0 %v572
      %v574 = vpop.xlane.xlu0 %573
      %v575 = vrcp.pop %v574
      %v576 = vmul.f32 %v571, %v575
      %v577 = vpack.c.bf16 %v576, %v576
      %v579 = vsel %vm368, %v577, 0
      %v582 = vsel %vm407, %v540, 0
      %584 = vmatpush.bf16.msra.mxu0 0
      %585 = vmatpush.bf16.msra.mxu0 0
      %586 = vmatpush.bf16.msra.mxu0 0
      %587 = vmatpush.bf16.msra.mxu0 0
      %588 = vmatpush.bf16.msra.mxu0 0
      %589 = vmatpush.bf16.msra.mxu0 0
      %590 = vmatpush.bf16.msra.mxu0 0
      %591 = vmatpush.bf16.msra.mxu0 %v582
      %592 = vmatmul.bf16.gmra.mxu0 %v579
      %v593 = vpop.f32.mrf.mxu0
      %v594 = vadd.f32 0.0, %v593
      %v595 = vpop.f32.mrf.mxu0
      %596 = vdwg.mxu0
      %v597 = vpack.c.bf16 %v594, %v594
      %v602 = vunpack.c.l.b16 %v356
      %v603 = vunpack.c.l.b16 %v357
      %v604 = vunpack.c.l.b16 %v358
      %v605 = vunpack.c.l.b16 %v359
      %v606 = vpack.c.b16 %v603, %v602
      %v607 = vpack.c.b16 %v605, %v604
      %v611 = vsel %vm249, %v597, 0
      %613 = vmatpush.bf16.msra.mxu0 0
      %614 = vmatpush.bf16.msra.mxu0 0
      %615 = vmatpush.bf16.msra.mxu0 0
      %616 = vmatpush.bf16.msra.mxu0 0
      %617 = vmatpush.bf16.msra.mxu0 0
      %618 = vmatpush.bf16.msra.mxu0 0
      %619 = vmatpush.bf16.msra.mxu0 %v607
      %620 = vmatpush.bf16.msra.mxu0 %v606
      %621 = vmatmul.bf16.gmra.mxu0 %v611
      %v622 = vpop.f32.mrf.mxu0
      %v623 = vadd.f32 0.0, %v622
      %v624 = vpop.f32.mrf.mxu0
      %625 = vdwg.mxu0
      %v626 = vadd.f32 %v537, %v623
      %627 = vrot.lane.b32.xlu0 %v364, 104
      %v628 = vpop.permute.xlu0 %627
      %629 = vrot.lane.b32.xlu0 %v364, 72
      %v630 = vpop.permute.xlu0 %629
      %v632 = vsel %vm368, %v628, 0
      %v635 = vsel %vm368, %v630, 0
      %637 = vmatpush.bf16.xpose.msra.mxu0 0
      %638 = vmatpush.bf16.xpose.msra.mxu0 0
      %639 = vmatpush.bf16.xpose.msra.mxu0 0
      %640 = vmatpush.bf16.xpose.msra.mxu0 0
      %641 = vmatpush.bf16.xpose.msra.mxu0 0
      %642 = vmatpush.bf16.xpose.msra.mxu0 0
      %643 = vmatpush.bf16.xpose.msra.mxu0 0
      %644 = vmatpush.bf16.xpose.msra.mxu0 %v635
      %645 = vmatmul.bf16.gmra.mxu0 %v632
      %v646 = vpop.f32.mrf.mxu0
      %v647 = vadd.f32 0.0, %v646
      %v648 = vpop.f32.mrf.mxu0
      %649 = vdwg.mxu0
      %v650 = vmul.f32 %v647, 0.35355338
      %v651 = vsel %vm347, %v650, -1e+30
      %v652 = vsel %vm368, %v651, -inf
      %653 = vmax.xlane.f32.xlu0 %v652
      %v654 = vpop.xlane.xlu0 %653
      %v655 = vsub.f32 %v651, %v654
      %v656 = vmul.f32 %v655, 1.442695
      %v657 = vpow.pop %v656
      %v658 = vsel %vm368, %v657, 0.0
      %659 = vadd.xlane.f32.xlu0 %v658
      %v660 = vpop.xlane.xlu0 %659
      %v661 = vrcp.pop %v660
      %v662 = vmul.f32 %v657, %v661
      %v663 = vpack.c.bf16 %v662, %v662
      %665 = vrot.lane.b32.xlu0 %v540, 96
      %v666 = vpop.permute.xlu0 %665
      %v668 = vsel %vm368, %v663, 0
      %v671 = vsel %vm407, %v666, 0
      %673 = vmatpush.bf16.msra.mxu0 0
      %674 = vmatpush.bf16.msra.mxu0 0
      %675 = vmatpush.bf16.msra.mxu0 0
      %676 = vmatpush.bf16.msra.mxu0 0
      %677 = vmatpush.bf16.msra.mxu0 0
      %678 = vmatpush.bf16.msra.mxu0 0
      %679 = vmatpush.bf16.msra.mxu0 0
      %680 = vmatpush.bf16.msra.mxu0 %v671
      %681 = vmatmul.bf16.gmra.mxu0 %v668
      %v682 = vpop.f32.mrf.mxu0
      %v683 = vadd.f32 0.0, %v682
      %v684 = vpop.f32.mrf.mxu0
      %685 = vdwg.mxu0
      %v686 = vpack.c.bf16 %v683, %v683
      %v691 = vunpack.c.l.b16 %v360
      %v692 = vunpack.c.l.b16 %v361
      %v693 = vunpack.c.l.b16 %v362
      %v694 = vunpack.c.l.b16 %v363
      %v695 = vpack.c.b16 %v692, %v691
      %v696 = vpack.c.b16 %v694, %v693
      %v700 = vsel %vm249, %v686, 0
      %702 = vmatpush.bf16.msra.mxu0 0
      %703 = vmatpush.bf16.msra.mxu0 0
      %704 = vmatpush.bf16.msra.mxu0 0
      %705 = vmatpush.bf16.msra.mxu0 0
      %706 = vmatpush.bf16.msra.mxu0 0
      %707 = vmatpush.bf16.msra.mxu0 0
      %708 = vmatpush.bf16.msra.mxu0 %v696
      %709 = vmatpush.bf16.msra.mxu0 %v695
      %710 = vmatmul.bf16.gmra.mxu0 %v700
      %v711 = vpop.f32.mrf.mxu0
      %v712 = vadd.f32 0.0, %v711
      %v713 = vpop.f32.mrf.mxu0
      %714 = vdwg.mxu0
      %v715 = vadd.f32 %v626, %v712
      %v716 = vadd.f32 %v248, %v715
      %v717 = vld [vmem:[%s5] sm:$0x1]
      %v719 = vperm.slane %v717, 0
      %v721 = vadd.f32 %v716, %v719
      %722 = vst.msk [vmem:[%s246] sm:$0xff] %vm249, %v721
      %p723 = scmp.lt.s32.totalorder %s17, 1
      %s724 = scalar_select %p723, %s17, 1
      %s725 = smul.addr %s724, 8
      %s726 = scalar_lea.vmem %s6, %s725
      // Predicated region
      $region45: #{transformer_lm_forward.5} parent=43 // pred_check
        %p727 = pneg %p166
      $region46: #{transformer_lm_forward.5} parent=43 // pred_check_branch
        %729 = sbr.rel (%p727) target = $region48
      $region47: #{transformer_lm_forward.5} parent=43 // pred_region
        _
      $region48: #{transformer_lm_forward.5} parent=43 // pred_fallthru
        _
    $region44: #{transformer_lm_forward.5} parent=5 // pred_fallthru
      _
    %p730 = scmp.le.s32.totalorder 2, %s12
    // Predicated region
    $region49: #{transformer_lm_forward.5} parent=5 // pred_check
      %p731 = pneg %p730
    $region50: #{transformer_lm_forward.5} parent=5 // pred_check_branch
      %733 = sbr.rel (%p731) target = $region52
    $region51: #{transformer_lm_forward.5} parent=5 // pred_region
      %s734 = ssub.s32 %s12, 2
      // Predicated region
      $region53: #{transformer_lm_forward.5} parent=51 // pred_check
        %p735 = pneg %p172
      $region54: #{transformer_lm_forward.5} parent=51 // pred_check_branch
        %737 = sbr.rel (%p735) target = $region56
      $region55: #{transformer_lm_forward.5} parent=51 // pred_region
        %p738 = scmp.lt.s32.totalorder %s18, 1
        %s739 = scalar_select %p738, %s18, 1
        %s740 = smul.addr %s739, 8
        %s741 = scalar_lea.vmem %s6, %s740
      $region56: #{transformer_lm_forward.5} parent=51 // pred_fallthru
        _
    $region52: #{transformer_lm_forward.5} parent=5 // pred_fallthru
      _
  $region6: #{transformer_lm_forward.5} parent=0 // loop_footer
    %s16 = sadd.s32 1, %s12
  $region7: #{transformer_lm_forward.5} parent=0 // loop_footer_branch
    %11 = sbr.rel target = $region3
  $region8: #{transformer_lm_forward.5} parent=0 // loop_exit
    _

</llo_original>
